<compile_context>
chip_gen: v7x
topology: tpu7x:2x2x1
jax: 0.10.0
libtpu: 0.0.40
codegen_flags: <defaults>
</compile_context>

<pallas_src>
import jax
import jax.numpy as jnp
from jax.experimental import pallas as pl
from jax.experimental.pallas import tpu as pltpu


def _round_up(n: int, m: int) -> int:
    return ((n + m - 1) // m) * m


def _genome_rnn_kernel(x_ref, wxh_ref, whh_ref, bh_ref, who_ref, bo_ref,
                       y_ref, ph_ref, h_ref):
    """One grid step == one (batch tile, time chunk) of the recurrent genome.

    Scratch:
      ph_ref: (Bb, Tb, Hp) f32 — holds p_t = x_t@W_xh + b_h, overwritten in
              place with h_t as the recurrence advances (h history).
      h_ref:  (Bb, Hp) f32 — persistent node values across time chunks.
    """
    c = pl.program_id(1)                      # time-chunk index (sequential)

    # Genome.reset(): zero node values at the first chunk of each batch tile.
    @pl.when(c == 0)
    def _():
        h_ref[...] = jnp.zeros_like(h_ref)

    Bb, Tb, I = x_ref.shape                   # static block shape
    Hp = whh_ref.shape[0]
    Op = who_ref.shape[1]
    f32, bf16 = jnp.float32, jnp.bfloat16

    # ---- hoisted input projection (off the serial path): ONE MXU matmul with
    #      M = Bb*Tb rows, bf16 operands, f32 accumulation ----
    x16 = x_ref[...].astype(bf16).reshape(Bb * Tb, I)
    p = jnp.dot(x16, wxh_ref[...], preferred_element_type=f32) + bh_ref[...]
    ph_ref[...] = p.reshape(Bb, Tb, Hp)

    # ---- serial recurrence: only h_t = tanh(p_t + h_{t-1} @ W_hh) per step.
    #      whh_ref is read at the dot site (no 16-vreg weight value pinned
    #      live across the unrolled loop). ----
    h = h_ref[...]                            # (Bb, Hp) f32 node values
    for tt in range(Tb):                      # Tb is compile-time -> static unroll
        z = ph_ref[:, tt, :] + jnp.dot(h.astype(bf16), whh_ref[...],
                                       preferred_element_type=f32)
        h = jnp.tanh(z)                       # f32 VPU/EUP math
        ph_ref[:, tt, :] = h                  # overwrite p_t slot with h_t
    h_ref[...] = h                            # persist node values to next chunk

    # ---- output projection off the serial chain: ONE batched matmul for the
    #      whole chunk + ONE lane-dense (Op multiple of 128) store ----
    hs = ph_ref[...].reshape(Bb * Tb, Hp).astype(bf16)
    y = jnp.dot(hs, who_ref[...], preferred_element_type=f32) + bo_ref[...]
    y_ref[...] = y.reshape(Bb, Tb, Op).astype(y_ref.dtype)


def prepare_genome_params(params):
    """Pad the genome's edge-weight matrices to vreg tiles (lanes=128) and cast
    the matmul operands to bf16.  Done ONCE at init, outside the per-call
    forward path (no per-call HBM pad copies)."""
    wxh, whh, bh, who, bo = (params["wxh"], params["whh"], params["bh"],
                             params["who"], params["bo"])
    I, H = wxh.shape
    O = who.shape[1]
    H_pad = _round_up(H, 128)
    O_pad = _round_up(O, 128)
    f32, bf16 = jnp.float32, jnp.bfloat16
    return {
        "wxh": jnp.pad(wxh.astype(f32), ((0, 0), (0, H_pad - H))).astype(bf16),
        "whh": jnp.pad(whh.astype(f32), ((0, H_pad - H), (0, H_pad - H))).astype(bf16),
        "bh":  jnp.pad(bh.astype(f32), ((0, 0), (0, H_pad - H))),
        "who": jnp.pad(who.astype(f32), ((0, H_pad - H), (0, O_pad - O))).astype(bf16),
        "bo":  jnp.pad(bo.astype(f32), ((0, 0), (0, O_pad - O))),
    }


def exastar_genome_forward(x_btf, padded_params, *, num_outputs,
                           t_block: int = 32, b_block: int = 128):
    """x_btf: [B, T, I] float32 input time series; padded_params from
    prepare_genome_params.  Returns {"output": [B, T, num_outputs]}."""
    wxh, whh, bh, who, bo = (padded_params["wxh"], padded_params["whh"],
                             padded_params["bh"], padded_params["who"],
                             padded_params["bo"])
    B, T, I = x_btf.shape
    H_pad = whh.shape[0]
    O_pad = who.shape[1]

    # Time chunking: grid handles long sequences; each chunk is statically
    # unrolled in-kernel.
    if T > t_block:
        assert t_block % 8 == 0, "t_block must be a multiple of 8 when chunking"
        Tb = t_block
    else:
        Tb = T
    T_pad = _round_up(T, Tb)
    n_chunks = T_pad // Tb

    # Batch tiling: sublane-align, and expose a parallel axis for megacore.
    B_pad = _round_up(B, 8)
    Bb = min(b_block, B_pad)
    B_pad = _round_up(B_pad, Bb)
    n_bt = B_pad // Bb

    f32 = jnp.float32
    x_p = jnp.pad(x_btf.astype(f32), ((0, B_pad - B), (0, T_pad - T), (0, 0)))

    def weight_spec(shape):
        kwargs = {}
        # Grid-invariant weights: single-buffer once they are big enough for
        # double-buffering to matter (v7x 64 MiB VMEM); leave default
        # pipelining at toy sizes.
        nbytes = shape[0] * shape[1] * 2  # bf16
        if nbytes >= (4 << 20):
            kwargs["pipeline_mode"] = pl.Buffered(1)
        return pl.BlockSpec(shape, lambda b, c: (0, 0), **kwargs)

    y_p = pl.pallas_call(
        _genome_rnn_kernel,
        out_shape=jax.ShapeDtypeStruct((B_pad, T_pad, O_pad), jnp.float32),
        grid_spec=pltpu.PrefetchScalarGridSpec(
            num_scalar_prefetch=0,
            grid=(n_bt, n_chunks),
            in_specs=[
                pl.BlockSpec((Bb, Tb, I), lambda b, c: (b, c, 0)),   # x chunk (batch-major)
                weight_spec((I, H_pad)),                              # W_xh (bf16)
                weight_spec((H_pad, H_pad)),                          # W_hh (bf16)
                pl.BlockSpec((1, H_pad), lambda b, c: (0, 0)),        # b_h  (f32)
                weight_spec((H_pad, O_pad)),                          # W_ho (bf16)
                pl.BlockSpec((1, O_pad), lambda b, c: (0, 0)),        # b_o  (f32)
            ],
            out_specs=pl.BlockSpec((Bb, Tb, O_pad), lambda b, c: (b, c, 0)),
            scratch_shapes=[
                pltpu.VMEM((Bb, Tb, H_pad), jnp.float32),   # p_t / h_t history
                pltpu.VMEM((Bb, H_pad), jnp.float32),       # persistent node values
            ],
        ),
        compiler_params=pltpu.CompilerParams(
            # Batch tiles are independent (parallel, shard across v7x cores);
            # time chunks carry the recurrence (arbitrary, sequential).
            dimension_semantics=("parallel", "arbitrary"),
            vmem_limit_bytes=64 * 1024 * 1024,
        ),
    )(x_p, wxh, whh, bh, who, bo)

    # Slice off padding; output stays batch-major (no wrapper transposes).
    return {"output": y_p[:B, :T, :num_outputs]}


def _reference_forward(x_btf, params):
    """Pure-JAX f32 reference (lax.scan over time) for correctness checking."""
    wxh, whh, bh, who, bo = (params["wxh"], params["whh"], params["bh"],
                             params["who"], params["bo"])
    B = x_btf.shape[0]
    H = whh.shape[0]

    def step(h, x_t):
        h_new = jnp.tanh(x_t @ wxh + h @ whh + bh)
        y_t = h_new @ who + bo
        return h_new, y_t

    h0 = jnp.zeros((B, H), jnp.float32)
    _, y_tbo = jax.lax.scan(step, h0, jnp.transpose(x_btf, (1, 0, 2)))
    return {"output": jnp.transpose(y_tbo, (1, 0, 2))}


def _init_params(key, num_inputs, num_hidden, num_outputs):
    """Deterministic synthetic genome weights (edge weights + node biases)."""
    k1, k2, k3 = jax.random.split(key, 3)
    s_in = 1.0 / jnp.sqrt(jnp.float32(num_inputs))
    s_h = 1.0 / jnp.sqrt(jnp.float32(num_hidden))
    return {
        "wxh": jax.random.normal(k1, (num_inputs, num_hidden), jnp.float32) * s_in,
        "whh": jax.random.normal(k2, (num_hidden, num_hidden), jnp.float32) * s_h,
        "bh": jnp.zeros((1, num_hidden), jnp.float32),
        "who": jax.random.normal(k3, (num_hidden, num_outputs), jnp.float32) * s_h,
        "bo": jnp.zeros((1, num_outputs), jnp.float32),
    }


if __name__ == "__main__":
    # TODO(synk): EXAStarGenome.forward is abstract; this realizes the standard
    # EXAMM recurrent-graph semantics densely (per-neuron values, tanh nodes).
    # Graph-editing / cloning / training methods are host-side bookkeeping and
    # have no kernel equivalent.
    B, T, I, H, O = 2, 8, 4, 32, 4

    key = jax.random.PRNGKey(0)
    k_params, k_x = jax.random.split(key)
    params = _init_params(k_params, I, H, O)
    x = jax.random.normal(k_x, (B, T, I), jnp.float32)  # input time series [B, T, I]

    # Pad / bf16-cast the genome weights ONCE, outside the jitted forward.
    padded_params = prepare_genome_params(params)

    fwd = jax.jit(exastar_genome_forward,
                  static_argnames=("num_outputs", "t_block", "b_block"))
    out = fwd(x, padded_params, num_outputs=O)
    y = jax.block_until_ready(out["output"])

    ref = _reference_forward(x, params)["output"]
    assert y.shape == (B, T, O)
    # bf16 MXU operands (f32 accumulation) vs an all-f32 reference: error
    # compounds through the recurrent tanh chain, so tolerance is loosened.
    assert jnp.allclose(y, ref, rtol=5e-2, atol=5e-2), "Pallas kernel mismatch vs reference"

    print("KERNEL_OK")
</pallas_src>

<mosaic_0001>
module attributes {stable_mosaic.version = 11 : i64} {
  func.func @_genome_rnn_kernel(%arg0: i32, %arg1: i32, %arg2: memref<8x8x4xf32, #tpu.memory_space<vmem>>, %arg3: memref<4x128xbf16, #tpu.memory_space<vmem>>, %arg4: memref<128x128xbf16, #tpu.memory_space<vmem>>, %arg5: memref<1x128xf32, #tpu.memory_space<vmem>>, %arg6: memref<128x128xbf16, #tpu.memory_space<vmem>>, %arg7: memref<1x128xf32, #tpu.memory_space<vmem>>, %arg8: memref<8x8x128xf32, #tpu.memory_space<vmem>>, %arg9: memref<8x8x128xf32, #tpu.memory_space<vmem>>, %arg10: memref<8x128xf32, #tpu.memory_space<vmem>>) attributes {dimension_semantics = [#tpu.dimension_semantics<parallel>, #tpu.dimension_semantics<arbitrary>], iteration_bounds = array<i64: 1, 1>, scalar_prefetch = 0 : i64, scratch_operands = 2 : i64, tpu.core_type = #tpu.core_type<tc>, window_params = [{transform_indices = @transform_0, window_bounds = array<i64: 8, 8, 4>}, {pipeline_mode = #tpu.pipeline_mode<synchronous>, transform_indices = @transform_1, window_bounds = array<i64: 4, 128>}, {pipeline_mode = #tpu.pipeline_mode<synchronous>, transform_indices = @transform_2, window_bounds = array<i64: 128, 128>}, {pipeline_mode = #tpu.pipeline_mode<synchronous>, transform_indices = @transform_3, window_bounds = array<i64: 1, 128>}, {pipeline_mode = #tpu.pipeline_mode<synchronous>, transform_indices = @transform_4, window_bounds = array<i64: 128, 128>}, {pipeline_mode = #tpu.pipeline_mode<synchronous>, transform_indices = @transform_5, window_bounds = array<i64: 1, 128>}, {transform_indices = @transform_6, window_bounds = array<i64: 8, 8, 128>}]} {
    %c0_i32 = arith.constant 0 : i32
    %0 = arith.cmpi eq, %arg1, %c0_i32 : i32
    %1 = arith.extui %0 : i1 to i32
    %c0_i32_0 = arith.constant 0 : i32
    %2 = arith.cmpi ne, %1, %c0_i32_0 : i32
    scf.if %2 {
      %cst_90 = arith.constant 0.000000e+00 : f32
      %105 = vector.broadcast %cst_90 : f32 to vector<8x128xf32>
      %c0_91 = arith.constant 0 : index
      %c0_92 = arith.constant 0 : index
      %106 = vector.load %arg10[%c0_91, %c0_92] : memref<8x128xf32, #tpu.memory_space<vmem>>, vector<8x128xf32>
      tpu.vector_store %arg10[%c0_91, %c0_92], %105 {strides = array<i32>} : memref<8x128xf32, #tpu.memory_space<vmem>>, vector<8x128xf32>,
    } else {
    }
    %c0 = arith.constant 0 : index
    %c0_1 = arith.constant 0 : index
    %c0_2 = arith.constant 0 : index
    %3 = vector.load %arg2[%c0, %c0_1, %c0_2] : memref<8x8x4xf32, #tpu.memory_space<vmem>>, vector<8x8x4xf32>
    %4 = arith.truncf %3 : vector<8x8x4xf32> to vector<8x8x4xbf16>
    %5 = vector.shape_cast %4 : vector<8x8x4xbf16> to vector<64x4xbf16>
    %c0_3 = arith.constant 0 : index
    %c0_4 = arith.constant 0 : index
    %6 = vector.load %arg3[%c0_3, %c0_4] : memref<4x128xbf16, #tpu.memory_space<vmem>>, vector<4x128xbf16>
    %cst = arith.constant dense<0.000000e+00> : vector<64x128xf32>
    %7 = tpu.matmul %5, %6, %cst {dimension_numbers = #tpu.dot_dimension_numbers<[1], [0], [0], [1], [0, 0, 1, 1], [], []>} : vector<64x4xbf16>, vector<4x128xbf16>, vector<64x128xf32> -> vector<64x128xf32>
    %c0_5 = arith.constant 0 : index
    %c0_6 = arith.constant 0 : index
    %8 = vector.load %arg5[%c0_5, %c0_6] : memref<1x128xf32, #tpu.memory_space<vmem>>, vector<1x128xf32>
    %9 = vector.broadcast %8 : vector<1x128xf32> to vector<64x128xf32>
    %10 = arith.addf %7, %9 : vector<64x128xf32>
    %11 = vector.shape_cast %10 : vector<64x128xf32> to vector<8x8x128xf32>
    %c0_7 = arith.constant 0 : index
    %c0_8 = arith.constant 0 : index
    %c0_9 = arith.constant 0 : index
    %12 = vector.load %arg9[%c0_7, %c0_8, %c0_9] : memref<8x8x128xf32, #tpu.memory_space<vmem>>, vector<8x8x128xf32>
    tpu.vector_store %arg9[%c0_7, %c0_8, %c0_9], %11 {strides = array<i32>} : memref<8x8x128xf32, #tpu.memory_space<vmem>>, vector<8x8x128xf32>,
    %c0_10 = arith.constant 0 : index
    %c0_11 = arith.constant 0 : index
    %13 = vector.load %arg10[%c0_10, %c0_11] : memref<8x128xf32, #tpu.memory_space<vmem>>, vector<8x128xf32>
    %c0_12 = arith.constant 0 : index
    %c0_13 = arith.constant 0 : index
    %c0_14 = arith.constant 0 : index
    %14 = vector.load %arg9[%c0_12, %c0_13, %c0_14] : memref<8x8x128xf32, #tpu.memory_space<vmem>>, vector<8x1x128xf32>
    %15 = vector.shape_cast %14 : vector<8x1x128xf32> to vector<8x128xf32>
    %16 = arith.truncf %13 : vector<8x128xf32> to vector<8x128xbf16>
    %c0_15 = arith.constant 0 : index
    %c0_16 = arith.constant 0 : index
    %17 = vector.load %arg4[%c0_15, %c0_16] : memref<128x128xbf16, #tpu.memory_space<vmem>>, vector<128x128xbf16>
    %cst_17 = arith.constant dense<0.000000e+00> : vector<8x128xf32>
    %18 = tpu.matmul %16, %17, %cst_17 {dimension_numbers = #tpu.dot_dimension_numbers<[1], [0], [0], [1], [0, 0, 1, 1], [], []>} : vector<8x128xbf16>, vector<128x128xbf16>, vector<8x128xf32> -> vector<8x128xf32>
    %19 = arith.addf %15, %18 : vector<8x128xf32>
    %20 = math.tanh %19 : vector<8x128xf32>
    %c0_18 = arith.constant 0 : index
    %c0_19 = arith.constant 0 : index
    %c0_20 = arith.constant 0 : index
    %21 = vector.load %arg9[%c0_18, %c0_19, %c0_20] : memref<8x8x128xf32, #tpu.memory_space<vmem>>, vector<8x1x128xf32>
    %22 = vector.shape_cast %21 : vector<8x1x128xf32> to vector<8x128xf32>
    %23 = vector.shape_cast %20 : vector<8x128xf32> to vector<8x1x128xf32>
    tpu.vector_store %arg9[%c0_18, %c0_19, %c0_20], %23 {strides = array<i32>} : memref<8x8x128xf32, #tpu.memory_space<vmem>>, vector<8x1x128xf32>,
    %c0_21 = arith.constant 0 : index
    %c1 = arith.constant 1 : index
    %c0_22 = arith.constant 0 : index
    %24 = vector.load %arg9[%c0_21, %c1, %c0_22] : memref<8x8x128xf32, #tpu.memory_space<vmem>>, vector<8x1x128xf32>
    %25 = vector.shape_cast %24 : vector<8x1x128xf32> to vector<8x128xf32>
    %26 = arith.truncf %20 : vector<8x128xf32> to vector<8x128xbf16>
    %c0_23 = arith.constant 0 : index
    %c0_24 = arith.constant 0 : index
    %27 = vector.load %arg4[%c0_23, %c0_24] : memref<128x128xbf16, #tpu.memory_space<vmem>>, vector<128x128xbf16>
    %cst_25 = arith.constant dense<0.000000e+00> : vector<8x128xf32>
    %28 = tpu.matmul %26, %27, %cst_25 {dimension_numbers = #tpu.dot_dimension_numbers<[1], [0], [0], [1], [0, 0, 1, 1], [], []>} : vector<8x128xbf16>, vector<128x128xbf16>, vector<8x128xf32> -> vector<8x128xf32>
    %29 = arith.addf %25, %28 : vector<8x128xf32>
    %30 = math.tanh %29 : vector<8x128xf32>
    %c0_26 = arith.constant 0 : index
    %c1_27 = arith.constant 1 : index
    %c0_28 = arith.constant 0 : index
    %31 = vector.load %arg9[%c0_26, %c1_27, %c0_28] : memref<8x8x128xf32, #tpu.memory_space<vmem>>, vector<8x1x128xf32>
    %32 = vector.shape_cast %31 : vector<8x1x128xf32> to vector<8x128xf32>
    %33 = vector.shape_cast %30 : vector<8x128xf32> to vector<8x1x128xf32>
    tpu.vector_store %arg9[%c0_26, %c1_27, %c0_28], %33 {strides = array<i32>} : memref<8x8x128xf32, #tpu.memory_space<vmem>>, vector<8x1x128xf32>,
    %c0_29 = arith.constant 0 : index
    %c2 = arith.constant 2 : index
    %c0_30 = arith.constant 0 : index
    %34 = vector.load %arg9[%c0_29, %c2, %c0_30] : memref<8x8x128xf32, #tpu.memory_space<vmem>>, vector<8x1x128xf32>
    %35 = vector.shape_cast %34 : vector<8x1x128xf32> to vector<8x128xf32>
    %36 = arith.truncf %30 : vector<8x128xf32> to vector<8x128xbf16>
    %c0_31 = arith.constant 0 : index
    %c0_32 = arith.constant 0 : index
    %37 = vector.load %arg4[%c0_31, %c0_32] : memref<128x128xbf16, #tpu.memory_space<vmem>>, vector<128x128xbf16>
    %cst_33 = arith.constant dense<0.000000e+00> : vector<8x128xf32>
    %38 = tpu.matmul %36, %37, %cst_33 {dimension_numbers = #tpu.dot_dimension_numbers<[1], [0], [0], [1], [0, 0, 1, 1], [], []>} : vector<8x128xbf16>, vector<128x128xbf16>, vector<8x128xf32> -> vector<8x128xf32>
    %39 = arith.addf %35, %38 : vector<8x128xf32>
    %40 = math.tanh %39 : vector<8x128xf32>
    %c0_34 = arith.constant 0 : index
    %c2_35 = arith.constant 2 : index
    %c0_36 = arith.constant 0 : index
    %41 = vector.load %arg9[%c0_34, %c2_35, %c0_36] : memref<8x8x128xf32, #tpu.memory_space<vmem>>, vector<8x1x128xf32>
    %42 = vector.shape_cast %41 : vector<8x1x128xf32> to vector<8x128xf32>
    %43 = vector.shape_cast %40 : vector<8x128xf32> to vector<8x1x128xf32>
    tpu.vector_store %arg9[%c0_34, %c2_35, %c0_36], %43 {strides = array<i32>} : memref<8x8x128xf32, #tpu.memory_space<vmem>>, vector<8x1x128xf32>,
    %c0_37 = arith.constant 0 : index
    %c3 = arith.constant 3 : index
    %c0_38 = arith.constant 0 : index
    %44 = vector.load %arg9[%c0_37, %c3, %c0_38] : memref<8x8x128xf32, #tpu.memory_space<vmem>>, vector<8x1x128xf32>
    %45 = vector.shape_cast %44 : vector<8x1x128xf32> to vector<8x128xf32>
    %46 = arith.truncf %40 : vector<8x128xf32> to vector<8x128xbf16>
    %c0_39 = arith.constant 0 : index
    %c0_40 = arith.constant 0 : index
    %47 = vector.load %arg4[%c0_39, %c0_40] : memref<128x128xbf16, #tpu.memory_space<vmem>>, vector<128x128xbf16>
    %cst_41 = arith.constant dense<0.000000e+00> : vector<8x128xf32>
    %48 = tpu.matmul %46, %47, %cst_41 {dimension_numbers = #tpu.dot_dimension_numbers<[1], [0], [0], [1], [0, 0, 1, 1], [], []>} : vector<8x128xbf16>, vector<128x128xbf16>, vector<8x128xf32> -> vector<8x128xf32>
    %49 = arith.addf %45, %48 : vector<8x128xf32>
    %50 = math.tanh %49 : vector<8x128xf32>
    %c0_42 = arith.constant 0 : index
    %c3_43 = arith.constant 3 : index
    %c0_44 = arith.constant 0 : index
    %51 = vector.load %arg9[%c0_42, %c3_43, %c0_44] : memref<8x8x128xf32, #tpu.memory_space<vmem>>, vector<8x1x128xf32>
    %52 = vector.shape_cast %51 : vector<8x1x128xf32> to vector<8x128xf32>
    %53 = vector.shape_cast %50 : vector<8x128xf32> to vector<8x1x128xf32>
    tpu.vector_store %arg9[%c0_42, %c3_43, %c0_44], %53 {strides = array<i32>} : memref<8x8x128xf32, #tpu.memory_space<vmem>>, vector<8x1x128xf32>,
    %c0_45 = arith.constant 0 : index
    %c4 = arith.constant 4 : index
    %c0_46 = arith.constant 0 : index
    %54 = vector.load %arg9[%c0_45, %c4, %c0_46] : memref<8x8x128xf32, #tpu.memory_space<vmem>>, vector<8x1x128xf32>
    %55 = vector.shape_cast %54 : vector<8x1x128xf32> to vector<8x128xf32>
    %56 = arith.truncf %50 : vector<8x128xf32> to vector<8x128xbf16>
    %c0_47 = arith.constant 0 : index
    %c0_48 = arith.constant 0 : index
    %57 = vector.load %arg4[%c0_47, %c0_48] : memref<128x128xbf16, #tpu.memory_space<vmem>>, vector<128x128xbf16>
    %cst_49 = arith.constant dense<0.000000e+00> : vector<8x128xf32>
    %58 = tpu.matmul %56, %57, %cst_49 {dimension_numbers = #tpu.dot_dimension_numbers<[1], [0], [0], [1], [0, 0, 1, 1], [], []>} : vector<8x128xbf16>, vector<128x128xbf16>, vector<8x128xf32> -> vector<8x128xf32>
    %59 = arith.addf %55, %58 : vector<8x128xf32>
    %60 = math.tanh %59 : vector<8x128xf32>
    %c0_50 = arith.constant 0 : index
    %c4_51 = arith.constant 4 : index
    %c0_52 = arith.constant 0 : index
    %61 = vector.load %arg9[%c0_50, %c4_51, %c0_52] : memref<8x8x128xf32, #tpu.memory_space<vmem>>, vector<8x1x128xf32>
    %62 = vector.shape_cast %61 : vector<8x1x128xf32> to vector<8x128xf32>
    %63 = vector.shape_cast %60 : vector<8x128xf32> to vector<8x1x128xf32>
    tpu.vector_store %arg9[%c0_50, %c4_51, %c0_52], %63 {strides = array<i32>} : memref<8x8x128xf32, #tpu.memory_space<vmem>>, vector<8x1x128xf32>,
    %c0_53 = arith.constant 0 : index
    %c5 = arith.constant 5 : index
    %c0_54 = arith.constant 0 : index
    %64 = vector.load %arg9[%c0_53, %c5, %c0_54] : memref<8x8x128xf32, #tpu.memory_space<vmem>>, vector<8x1x128xf32>
    %65 = vector.shape_cast %64 : vector<8x1x128xf32> to vector<8x128xf32>
    %66 = arith.truncf %60 : vector<8x128xf32> to vector<8x128xbf16>
    %c0_55 = arith.constant 0 : index
    %c0_56 = arith.constant 0 : index
    %67 = vector.load %arg4[%c0_55, %c0_56] : memref<128x128xbf16, #tpu.memory_space<vmem>>, vector<128x128xbf16>
    %cst_57 = arith.constant dense<0.000000e+00> : vector<8x128xf32>
    %68 = tpu.matmul %66, %67, %cst_57 {dimension_numbers = #tpu.dot_dimension_numbers<[1], [0], [0], [1], [0, 0, 1, 1], [], []>} : vector<8x128xbf16>, vector<128x128xbf16>, vector<8x128xf32> -> vector<8x128xf32>
    %69 = arith.addf %65, %68 : vector<8x128xf32>
    %70 = math.tanh %69 : vector<8x128xf32>
    %c0_58 = arith.constant 0 : index
    %c5_59 = arith.constant 5 : index
    %c0_60 = arith.constant 0 : index
    %71 = vector.load %arg9[%c0_58, %c5_59, %c0_60] : memref<8x8x128xf32, #tpu.memory_space<vmem>>, vector<8x1x128xf32>
    %72 = vector.shape_cast %71 : vector<8x1x128xf32> to vector<8x128xf32>
    %73 = vector.shape_cast %70 : vector<8x128xf32> to vector<8x1x128xf32>
    tpu.vector_store %arg9[%c0_58, %c5_59, %c0_60], %73 {strides = array<i32>} : memref<8x8x128xf32, #tpu.memory_space<vmem>>, vector<8x1x128xf32>,
    %c0_61 = arith.constant 0 : index
    %c6 = arith.constant 6 : index
    %c0_62 = arith.constant 0 : index
    %74 = vector.load %arg9[%c0_61, %c6, %c0_62] : memref<8x8x128xf32, #tpu.memory_space<vmem>>, vector<8x1x128xf32>
    %75 = vector.shape_cast %74 : vector<8x1x128xf32> to vector<8x128xf32>
    %76 = arith.truncf %70 : vector<8x128xf32> to vector<8x128xbf16>
    %c0_63 = arith.constant 0 : index
    %c0_64 = arith.constant 0 : index
    %77 = vector.load %arg4[%c0_63, %c0_64] : memref<128x128xbf16, #tpu.memory_space<vmem>>, vector<128x128xbf16>
    %cst_65 = arith.constant dense<0.000000e+00> : vector<8x128xf32>
    %78 = tpu.matmul %76, %77, %cst_65 {dimension_numbers = #tpu.dot_dimension_numbers<[1], [0], [0], [1], [0, 0, 1, 1], [], []>} : vector<8x128xbf16>, vector<128x128xbf16>, vector<8x128xf32> -> vector<8x128xf32>
    %79 = arith.addf %75, %78 : vector<8x128xf32>
    %80 = math.tanh %79 : vector<8x128xf32>
    %c0_66 = arith.constant 0 : index
    %c6_67 = arith.constant 6 : index
    %c0_68 = arith.constant 0 : index
    %81 = vector.load %arg9[%c0_66, %c6_67, %c0_68] : memref<8x8x128xf32, #tpu.memory_space<vmem>>, vector<8x1x128xf32>
    %82 = vector.shape_cast %81 : vector<8x1x128xf32> to vector<8x128xf32>
    %83 = vector.shape_cast %80 : vector<8x128xf32> to vector<8x1x128xf32>
    tpu.vector_store %arg9[%c0_66, %c6_67, %c0_68], %83 {strides = array<i32>} : memref<8x8x128xf32, #tpu.memory_space<vmem>>, vector<8x1x128xf32>,
    %c0_69 = arith.constant 0 : index
    %c7 = arith.constant 7 : index
    %c0_70 = arith.constant 0 : index
    %84 = vector.load %arg9[%c0_69, %c7, %c0_70] : memref<8x8x128xf32, #tpu.memory_space<vmem>>, vector<8x1x128xf32>
    %85 = vector.shape_cast %84 : vector<8x1x128xf32> to vector<8x128xf32>
    %86 = arith.truncf %80 : vector<8x128xf32> to vector<8x128xbf16>
    %c0_71 = arith.constant 0 : index
    %c0_72 = arith.constant 0 : index
    %87 = vector.load %arg4[%c0_71, %c0_72] : memref<128x128xbf16, #tpu.memory_space<vmem>>, vector<128x128xbf16>
    %cst_73 = arith.constant dense<0.000000e+00> : vector<8x128xf32>
    %88 = tpu.matmul %86, %87, %cst_73 {dimension_numbers = #tpu.dot_dimension_numbers<[1], [0], [0], [1], [0, 0, 1, 1], [], []>} : vector<8x128xbf16>, vector<128x128xbf16>, vector<8x128xf32> -> vector<8x128xf32>
    %89 = arith.addf %85, %88 : vector<8x128xf32>
    %90 = math.tanh %89 : vector<8x128xf32>
    %c0_74 = arith.constant 0 : index
    %c7_75 = arith.constant 7 : index
    %c0_76 = arith.constant 0 : index
    %91 = vector.load %arg9[%c0_74, %c7_75, %c0_76] : memref<8x8x128xf32, #tpu.memory_space<vmem>>, vector<8x1x128xf32>
    %92 = vector.shape_cast %91 : vector<8x1x128xf32> to vector<8x128xf32>
    %93 = vector.shape_cast %90 : vector<8x128xf32> to vector<8x1x128xf32>
    tpu.vector_store %arg9[%c0_74, %c7_75, %c0_76], %93 {strides = array<i32>} : memref<8x8x128xf32, #tpu.memory_space<vmem>>, vector<8x1x128xf32>,
    %c0_77 = arith.constant 0 : index
    %c0_78 = arith.constant 0 : index
    %94 = vector.load %arg10[%c0_77, %c0_78] : memref<8x128xf32, #tpu.memory_space<vmem>>, vector<8x128xf32>
    tpu.vector_store %arg10[%c0_77, %c0_78], %90 {strides = array<i32>} : memref<8x128xf32, #tpu.memory_space<vmem>>, vector<8x128xf32>,
    %c0_79 = arith.constant 0 : index
    %c0_80 = arith.constant 0 : index
    %c0_81 = arith.constant 0 : index
    %95 = vector.load %arg9[%c0_79, %c0_80, %c0_81] : memref<8x8x128xf32, #tpu.memory_space<vmem>>, vector<8x8x128xf32>
    %96 = vector.shape_cast %95 : vector<8x8x128xf32> to vector<64x128xf32>
    %97 = arith.truncf %96 : vector<64x128xf32> to vector<64x128xbf16>
    %c0_82 = arith.constant 0 : index
    %c0_83 = arith.constant 0 : index
    %98 = vector.load %arg6[%c0_82, %c0_83] : memref<128x128xbf16, #tpu.memory_space<vmem>>, vector<128x128xbf16>
    %cst_84 = arith.constant dense<0.000000e+00> : vector<64x128xf32>
    %99 = tpu.matmul %97, %98, %cst_84 {dimension_numbers = #tpu.dot_dimension_numbers<[1], [0], [0], [1], [0, 0, 1, 1], [], []>} : vector<64x128xbf16>, vector<128x128xbf16>, vector<64x128xf32> -> vector<64x128xf32>
    %c0_85 = arith.constant 0 : index
    %c0_86 = arith.constant 0 : index
    %100 = vector.load %arg7[%c0_85, %c0_86] : memref<1x128xf32, #tpu.memory_space<vmem>>, vector<1x128xf32>
    %101 = vector.broadcast %100 : vector<1x128xf32> to vector<64x128xf32>
    %102 = arith.addf %99, %101 : vector<64x128xf32>
    %103 = vector.shape_cast %102 : vector<64x128xf32> to vector<8x8x128xf32>
    %c0_87 = arith.constant 0 : index
    %c0_88 = arith.constant 0 : index
    %c0_89 = arith.constant 0 : index
    %104 = vector.load %arg8[%c0_87, %c0_88, %c0_89] : memref<8x8x128xf32, #tpu.memory_space<vmem>>, vector<8x8x128xf32>
    tpu.vector_store %arg8[%c0_87, %c0_88, %c0_89], %103 {strides = array<i32>} : memref<8x8x128xf32, #tpu.memory_space<vmem>>, vector<8x8x128xf32>,
    return
  }
  func.func @transform_0(%arg0: i32, %arg1: i32) -> (i32, i32, i32) {
    %c0_i32 = arith.constant 0 : i32
    %c0_i32_0 = arith.constant 0 : i32
    return %arg0, %arg1, %c0_i32 : i32, i32, i32
  }
  func.func @transform_1(%arg0: i32, %arg1: i32) -> (i32, i32) {
    %c0_i32 = arith.constant 0 : i32
    %c0_i32_0 = arith.constant 0 : i32
    %c0_i32_1 = arith.constant 0 : i32
    return %c0_i32, %c0_i32_0 : i32, i32
  }
  func.func @transform_2(%arg0: i32, %arg1: i32) -> (i32, i32) {
    %c0_i32 = arith.constant 0 : i32
    %c0_i32_0 = arith.constant 0 : i32
    %c0_i32_1 = arith.constant 0 : i32
    return %c0_i32, %c0_i32_0 : i32, i32
  }
  func.func @transform_3(%arg0: i32, %arg1: i32) -> (i32, i32) {
    %c0_i32 = arith.constant 0 : i32
    %c0_i32_0 = arith.constant 0 : i32
    %c0_i32_1 = arith.constant 0 : i32
    return %c0_i32, %c0_i32_0 : i32, i32
  }
  func.func @transform_4(%arg0: i32, %arg1: i32) -> (i32, i32) {
    %c0_i32 = arith.constant 0 : i32
    %c0_i32_0 = arith.constant 0 : i32
    %c0_i32_1 = arith.constant 0 : i32
    return %c0_i32, %c0_i32_0 : i32, i32
  }
  func.func @transform_5(%arg0: i32, %arg1: i32) -> (i32, i32) {
    %c0_i32 = arith.constant 0 : i32
    %c0_i32_0 = arith.constant 0 : i32
    %c0_i32_1 = arith.constant 0 : i32
    return %c0_i32, %c0_i32_0 : i32, i32
  }
  func.func @transform_6(%arg0: i32, %arg1: i32) -> (i32, i32, i32) {
    %c0_i32 = arith.constant 0 : i32
    %c0_i32_0 = arith.constant 0 : i32
    return %arg0, %arg1, %c0_i32 : i32, i32, i32
  }
}

</mosaic_0001>

<llo_original>
// kernel: exastar_genome_forward.1
$region0: #{exastar_genome_forward.1}
  #allocation0 [shape = 'u32[]', space=smem, size = 0x4, offset = 0x4, fixed_abs, tag = 'smem constant byte address 0x4 - core index']
  #allocation1 [shape = 'u32[144,128]{1,0:T(1,128)}', space=vmem, size = 0x12000, scoped, tag = 'internal scratch']
  #allocation2 [shape = 'f32[8,8,128]{2,1,0:T(8,128)}', space=vmem, size = 0x8000, scoped, tag = 'scratch operand']
  #allocation3 [shape = 'f32[8,128]{1,0:T(8,128)}', space=vmem, size = 0x1000, scoped, tag = 'scratch operand']
  %s0 = inlined_call_operand.hbm [shape: f32[8,8,4], index: 0, kind: input, shape index: {}]
  %s1 = inlined_call_operand.hbm [shape: bf16[4,128], index: 1, kind: input, shape index: {}]
  %s2 = inlined_call_operand.hbm [shape: bf16[128,128], index: 2, kind: input, shape index: {}]
  %s3 = inlined_call_operand.hbm [shape: f32[1,128], index: 3, kind: input, shape index: {}]
  %s4 = inlined_call_operand.hbm [shape: bf16[128,128], index: 4, kind: input, shape index: {}]
  %s5 = inlined_call_operand.hbm [shape: f32[1,128], index: 5, kind: input, shape index: {}]
  %s6 = inlined_call_operand.hbm [shape: f32[8,8,128], index: 6, kind: output, shape index: {}]
  %s7 = sld [smem:[#allocation0]]
  $region62: #{exastar_genome_forward.1} parent=0
    _
  %s9 = ssub.s32 1, %s7
  %s10 = scalar_select 0, %s9, %s7
  $region1: #{exastar_genome_forward.1} parent=0
    #allocation4 [shape = 'u8[32768]{0}', space=vmem, size = 0x8000, scoped, tag = 'input window, operand 0, single buffered']
    #allocation5 [shape = 's32[1]{0}', space=sflag, size = 0x4, scoped, tag = 'scoped memory for exastar_genome_forward.1']
    #allocation6 [shape = 's32[1]{0}', space=sflag, size = 0x4, scoped, tag = 'scoped memory for exastar_genome_forward.1']
    #allocation7 [shape = 'u8[1024]{0}', space=vmem, size = 0x400, scoped, tag = 'input window, operand 1, single buffered']
    #allocation8 [shape = 's32[1]{0}', space=sflag, size = 0x4, scoped, tag = 'scoped memory for exastar_genome_forward.1']
    #allocation9 [shape = 'u8[32768]{0}', space=vmem, size = 0x8000, scoped, tag = 'input window, operand 2, single buffered']
    #allocation10 [shape = 'u8[512]{0}', space=vmem, size = 0x400, scoped, tag = 'input window, operand 3, single buffered']
    #allocation11 [shape = 's32[1]{0}', space=sflag, size = 0x4, scoped, tag = 'scoped memory for exastar_genome_forward.1']
    #allocation12 [shape = 'u8[32768]{0}', space=vmem, size = 0x8000, scoped, tag = 'input window, operand 4, single buffered']
    #allocation13 [shape = 'u8[512]{0}', space=vmem, size = 0x400, scoped, tag = 'input window, operand 5, single buffered']
    #allocation14 [shape = 's32[1]{0}', space=sflag, size = 0x4, scoped, tag = 'scoped memory for exastar_genome_forward.1']
    #allocation15 [shape = 'u8[32768]{0}', space=vmem, size = 0x8000, scoped, tag = 'output window, operand 0, single buffered']
    %11 = vsyncpa [#allocation5], 0
    %12 = vsyncpa [#allocation8], 0
    %13 = vsyncpa [#allocation11], 0
    %14 = vsyncpa [#allocation14], 0
    %15 = vsyncpa [#allocation6], 0
    // Predicated region
    $region2: #{exastar_genome_forward.1} parent=1 // pred_check
      _
    $region3: #{exastar_genome_forward.1} parent=1 // pred_check_branch
      %17 = sbr.rel (0) target = $region5
    $region4: #{exastar_genome_forward.1} parent=1 // pred_region
      %s19 = ssub.s32 1024, 1024
      %20 = vsyncadd [#allocation5], %s19
      %s21 = sshll.u32 [#allocation4], 4
      %s22 = int_to_ptr.vmem [resolvable:$true] %s21
      %27 = dma.hbm_to_vmem [thread:$0]  %s0, 1024, %s22, [#allocation5], 128, 128, 8
    $region5: #{exastar_genome_forward.1} parent=1 // pred_fallthru
      _
    // Predicated region
    $region6: #{exastar_genome_forward.1} parent=1 // pred_check
      _
    $region7: #{exastar_genome_forward.1} parent=1 // pred_check_branch
      %29 = sbr.rel (0) target = $region9
    $region8: #{exastar_genome_forward.1} parent=1 // pred_region
      %s31 = ssub.s32 32, 32
      %32 = vsyncadd [#allocation8], %s31
      %s34 = sshll.u32 [#allocation7], 4
      %s35 = int_to_ptr.vmem [resolvable:$true] %s34
      %37 = dma.hbm_to_vmem [thread:$0]  %s1, 32, %s35, [#allocation8]
    $region9: #{exastar_genome_forward.1} parent=1 // pred_fallthru
      _
    // Predicated region
    $region10: #{exastar_genome_forward.1} parent=1 // pred_check
      _
    $region11: #{exastar_genome_forward.1} parent=1 // pred_check_branch
      %39 = sbr.rel (0) target = $region13
    $region12: #{exastar_genome_forward.1} parent=1 // pred_region
      %s41 = ssub.s32 1024, 1024
      %42 = vsyncadd [#allocation8], %s41
      %s43 = sshll.u32 [#allocation9], 4
      %s44 = int_to_ptr.vmem [resolvable:$true] %s43
      %49 = dma.hbm_to_vmem [thread:$0]  %s2, 1024, %s44, [#allocation8], 64, 64, 4
    $region13: #{exastar_genome_forward.1} parent=1 // pred_fallthru
      _
    // Predicated region
    $region14: #{exastar_genome_forward.1} parent=1 // pred_check
      _
    $region15: #{exastar_genome_forward.1} parent=1 // pred_check_branch
      %51 = sbr.rel (0) target = $region17
    $region16: #{exastar_genome_forward.1} parent=1 // pred_region
      %s53 = ssub.s32 16, 16
      %54 = vsyncadd [#allocation11], %s53
      %s56 = sshll.u32 [#allocation10], 4
      %s57 = int_to_ptr.vmem [resolvable:$true] %s56
      %59 = dma.hbm_to_vmem [thread:$0]  %s3, 16, %s57, [#allocation11]
    $region17: #{exastar_genome_forward.1} parent=1 // pred_fallthru
      _
    // Predicated region
    $region18: #{exastar_genome_forward.1} parent=1 // pred_check
      _
    $region19: #{exastar_genome_forward.1} parent=1 // pred_check_branch
      %61 = sbr.rel (0) target = $region21
    $region20: #{exastar_genome_forward.1} parent=1 // pred_region
      %s63 = ssub.s32 1024, 1024
      %64 = vsyncadd [#allocation11], %s63
      %s65 = sshll.u32 [#allocation12], 4
      %s66 = int_to_ptr.vmem [resolvable:$true] %s65
      %71 = dma.hbm_to_vmem [thread:$0]  %s4, 1024, %s66, [#allocation11], 64, 64, 4
    $region21: #{exastar_genome_forward.1} parent=1 // pred_fallthru
      _
    // Predicated region
    $region22: #{exastar_genome_forward.1} parent=1 // pred_check
      _
    $region23: #{exastar_genome_forward.1} parent=1 // pred_check_branch
      %73 = sbr.rel (0) target = $region25
    $region24: #{exastar_genome_forward.1} parent=1 // pred_region
      %s75 = ssub.s32 16, 16
      %76 = vsyncadd [#allocation14], %s75
      %s78 = sshll.u32 [#allocation13], 4
      %s79 = int_to_ptr.vmem [resolvable:$true] %s78
      %81 = dma.hbm_to_vmem [thread:$0]  %s5, 16, %s79, [#allocation14]
    $region25: #{exastar_genome_forward.1} parent=1 // pred_fallthru
      _
    // Predicated region
    $region26: #{exastar_genome_forward.1} parent=1 // pred_check
      _
    $region27: #{exastar_genome_forward.1} parent=1 // pred_check_branch
      %83 = sbr.rel (0) target = $region29
    $region28: #{exastar_genome_forward.1} parent=1 // pred_region
      %84 = dma.done [#allocation5], 1024
    $region29: #{exastar_genome_forward.1} parent=1 // pred_fallthru
      _
    // Predicated region
    $region30: #{exastar_genome_forward.1} parent=1 // pred_check
      _
    $region31: #{exastar_genome_forward.1} parent=1 // pred_check_branch
      %86 = sbr.rel (0) target = $region33
    $region32: #{exastar_genome_forward.1} parent=1 // pred_region
      %87 = dma.done [#allocation8], 32
    $region33: #{exastar_genome_forward.1} parent=1 // pred_fallthru
      _
    // Predicated region
    $region34: #{exastar_genome_forward.1} parent=1 // pred_check
      _
    $region35: #{exastar_genome_forward.1} parent=1 // pred_check_branch
      %89 = sbr.rel (0) target = $region37
    $region36: #{exastar_genome_forward.1} parent=1 // pred_region
      %90 = dma.done [#allocation8], 1024
    $region37: #{exastar_genome_forward.1} parent=1 // pred_fallthru
      _
    // Predicated region
    $region38: #{exastar_genome_forward.1} parent=1 // pred_check
      _
    $region39: #{exastar_genome_forward.1} parent=1 // pred_check_branch
      %92 = sbr.rel (0) target = $region41
    $region40: #{exastar_genome_forward.1} parent=1 // pred_region
      %93 = dma.done [#allocation11], 16
    $region41: #{exastar_genome_forward.1} parent=1 // pred_fallthru
      _
    // Predicated region
    $region42: #{exastar_genome_forward.1} parent=1 // pred_check
      _
    $region43: #{exastar_genome_forward.1} parent=1 // pred_check_branch
      %95 = sbr.rel (0) target = $region45
    $region44: #{exastar_genome_forward.1} parent=1 // pred_region
      %96 = dma.done [#allocation11], 1024
    $region45: #{exastar_genome_forward.1} parent=1 // pred_fallthru
      _
    // Predicated region
    $region46: #{exastar_genome_forward.1} parent=1 // pred_check
      _
    $region47: #{exastar_genome_forward.1} parent=1 // pred_check_branch
      %98 = sbr.rel (0) target = $region49
    $region48: #{exastar_genome_forward.1} parent=1 // pred_region
      %99 = dma.done [#allocation14], 16
    $region49: #{exastar_genome_forward.1} parent=1 // pred_fallthru
      _
    %p101 = scmp.eq.s32.totalorder 0, 0
    // Predicated region
    $region50: #{exastar_genome_forward.1} parent=1 // pred_check
      %p102 = pneg %p101
    $region51: #{exastar_genome_forward.1} parent=1 // pred_check_branch
      %104 = sbr.rel (%p102) target = $region53
    $region52: #{exastar_genome_forward.1} parent=1 // pred_region
      %105 = vst [vmem:[#allocation3] sm:$0xff] 0.0
    $region53: #{exastar_genome_forward.1} parent=1 // pred_fallthru
      _
    %v106 = vld [vmem:[#allocation4] sm:$0xff]
    %v107 = vld [vmem:[#allocation4 + $0x8] sm:$0xff]
    %v108 = vld [vmem:[#allocation4 + $0x10] sm:$0xff]
    %v109 = vld [vmem:[#allocation4 + $0x18] sm:$0xff]
    %v110 = vld [vmem:[#allocation4 + $0x20] sm:$0xff]
    %v111 = vld [vmem:[#allocation4 + $0x28] sm:$0xff]
    %v112 = vld [vmem:[#allocation4 + $0x30] sm:$0xff]
    %v113 = vld [vmem:[#allocation4 + $0x38] sm:$0xff]
    %v114 = vpack.c.bf16 %v106, %v106
    %v115 = vpack.c.bf16 %v107, %v107
    %v116 = vpack.c.bf16 %v108, %v108
    %v117 = vpack.c.bf16 %v109, %v109
    %v118 = vpack.c.bf16 %v110, %v110
    %v119 = vpack.c.bf16 %v111, %v111
    %v120 = vpack.c.bf16 %v112, %v112
    %v121 = vpack.c.bf16 %v113, %v113
    %v122 = vld [vmem:[#allocation7] sm:$0x3]
    %v123 = vld [vmem:[#allocation10] sm:$0x1]
    %v125 = vlaneseq
    %v126 = vshrl.u32 %v125, 7
    %v127 = vsub.s32 0, %v126
    %v128 = vrot.slane %v123, %v127
    %v138 = vunpack.c.l.b16 %v114
    %v139 = vunpack.c.l.b16 %v115
    %v140 = vunpack.c.l.b16 %v116
    %v141 = vunpack.c.l.b16 %v117
    %v142 = vunpack.c.l.b16 %v118
    %v143 = vunpack.c.l.b16 %v119
    %v144 = vunpack.c.l.b16 %v120
    %v145 = vunpack.c.l.b16 %v121
    %v146 = vpack.c.b16 %v139, %v138
    %v147 = vpack.c.b16 %v141, %v140
    %v148 = vpack.c.b16 %v143, %v142
    %v149 = vpack.c.b16 %v145, %v144
    %vm150 = vcmask 31744
    %v152 = vsel %vm150, %v146, 0
    %v155 = vsel %vm150, %v147, 0
    %v158 = vsel %vm150, %v148, 0
    %v161 = vsel %vm150, %v149, 0
    %vm163 = vcmask 1041408
    %v165 = vsel %vm163, %v122, 0
    %167 = vmatprep.subr.bf16.mxu0 0
    %168 = vmatpush1.bf16.msra.mxu0 %v165
    %169 = vmatprep.subr.bf16.mxu0 0
    %170 = vmatpush1.bf16.msra.mxu0 0
    %171 = vmatprep.subr.bf16.mxu0 0
    %172 = vmatpush1.bf16.msra.mxu0 0
    %173 = vmatprep.subr.bf16.mxu0 0
    %174 = vmatpush1.bf16.msra.mxu0 0
    %175 = vmatprep.subr.bf16.mxu0 0
    %176 = vmatpush1.bf16.msra.mxu0 0
    %177 = vmatprep.subr.bf16.mxu0 0
    %178 = vmatpush1.bf16.msra.mxu0 0
    %179 = vmatprep.subr.bf16.mxu0 0
    %180 = vmatpush1.bf16.msra.mxu0 0
    %181 = vmatprep.subr.bf16.mxu0 0
    %182 = vmatpush1.bf16.msra.mxu0 0
    %183 = vmatprep.subr.bf16.mxu0 0
    %184 = vmatpush1.bf16.msra.mxu0 0
    %185 = vmatprep.subr.bf16.mxu0 0
    %186 = vmatpush1.bf16.msra.mxu0 0
    %187 = vmatprep.subr.bf16.mxu0 0
    %188 = vmatpush1.bf16.msra.mxu0 0
    %189 = vmatprep.subr.bf16.mxu0 0
    %190 = vmatpush1.bf16.msra.mxu0 0
    %191 = vmatprep.subr.bf16.mxu0 0
    %192 = vmatpush1.bf16.msra.mxu0 0
    %193 = vmatprep.subr.bf16.mxu0 0
    %194 = vmatpush1.bf16.msra.mxu0 0
    %195 = vmatprep.subr.bf16.mxu0 0
    %196 = vmatpush1.bf16.msra.mxu0 0
    %197 = vmatprep.subr.bf16.mxu0 0
    %198 = vmatpush1.bf16.msra.mxu0 0
    %199 = vmatprep.mubr.bf16.mxu0 0
    %200 = vmatmul.mubr.bf16.gmra.mrb[0].mxu0 %v152
    %v201 = vpop.f32.mrb[0].mxu0
    %v202 = vadd.f32 %v128, %v201
    %v203 = vpop.f32.mrb[0].mxu0
    %v204 = vpop.f32.mrb[0].mxu0
    %v205 = vadd.f32 %v128, %v204
    %v206 = vpop.f32.mrb[0].mxu0
    %207 = vmatprep.mubr.bf16.mxu0 0
    %208 = vmatmul.mubr.bf16.gmra.mrb[0].mxu0 %v155
    %v209 = vpop.f32.mrb[0].mxu0
    %v210 = vadd.f32 %v128, %v209
    %v211 = vpop.f32.mrb[0].mxu0
    %v212 = vpop.f32.mrb[0].mxu0
    %v213 = vadd.f32 %v128, %v212
    %v214 = vpop.f32.mrb[0].mxu0
    %215 = vmatprep.mubr.bf16.mxu0 0
    %216 = vmatmul.mubr.bf16.gmra.mrb[0].mxu0 %v158
    %v217 = vpop.f32.mrb[0].mxu0
    %v218 = vadd.f32 %v128, %v217
    %v219 = vpop.f32.mrb[0].mxu0
    %v220 = vpop.f32.mrb[0].mxu0
    %v221 = vadd.f32 %v128, %v220
    %v222 = vpop.f32.mrb[0].mxu0
    %223 = vmatprep.mubr.bf16.mxu0 0
    %224 = vmatmul.mubr.bf16.gmra.mrb[0].mxu0 %v161
    %v225 = vpop.f32.mrb[0].mxu0
    %v226 = vadd.f32 %v128, %v225
    %v227 = vpop.f32.mrb[0].mxu0
    %v228 = vpop.f32.mrb[0].mxu0
    %v229 = vadd.f32 %v128, %v228
    %v230 = vpop.f32.mrb[0].mxu0
    %231 = vdwg.mxu0
    %232 = vst [vmem:[#allocation2] sm:$0xff] %v202
    %233 = vst [vmem:[#allocation2 + $0x8] sm:$0xff] %v205
    %234 = vst [vmem:[#allocation2 + $0x10] sm:$0xff] %v210
    %235 = vst [vmem:[#allocation2 + $0x18] sm:$0xff] %v213
    %236 = vst [vmem:[#allocation2 + $0x20] sm:$0xff] %v218
    %237 = vst [vmem:[#allocation2 + $0x28] sm:$0xff] %v221
    %238 = vst [vmem:[#allocation2 + $0x30] sm:$0xff] %v226
    %239 = vst [vmem:[#allocation2 + $0x38] sm:$0xff] %v229
    %v240 = vld [vmem:[#allocation3] sm:$0xff]
    %v241 = vld [vmem:[#allocation2] sm:$0x1]
    %v242 = vld [vmem:[#allocation2 + $0x8] sm:$0x1]
    %v243 = vld [vmem:[#allocation2 + $0x10] sm:$0x1]
    %v244 = vld [vmem:[#allocation2 + $0x18] sm:$0x1]
    %v245 = vld [vmem:[#allocation2 + $0x20] sm:$0x1]
    %v246 = vld [vmem:[#allocation2 + $0x28] sm:$0x1]
    %v247 = vld [vmem:[#allocation2 + $0x30] sm:$0x1]
    %v248 = vld [vmem:[#allocation2 + $0x38] sm:$0x1]
    %v249 = vpack.c.bf16 %v240, %v240
    %v250 = vld [vmem:[#allocation9] sm:$0xf]
    %v251 = vld [vmem:[#allocation9 + $0x4] sm:$0xf]
    %v252 = vld [vmem:[#allocation9 + $0x8] sm:$0xf]
    %v253 = vld [vmem:[#allocation9 + $0xc] sm:$0xf]
    %v254 = vld [vmem:[#allocation9 + $0x10] sm:$0xf]
    %v255 = vld [vmem:[#allocation9 + $0x14] sm:$0xf]
    %v256 = vld [vmem:[#allocation9 + $0x18] sm:$0xf]
    %v257 = vld [vmem:[#allocation9 + $0x1c] sm:$0xf]
    %v258 = vld [vmem:[#allocation9 + $0x20] sm:$0xf]
    %v259 = vld [vmem:[#allocation9 + $0x24] sm:$0xf]
    %v260 = vld [vmem:[#allocation9 + $0x28] sm:$0xf]
    %v261 = vld [vmem:[#allocation9 + $0x2c] sm:$0xf]
    %v262 = vld [vmem:[#allocation9 + $0x30] sm:$0xf]
    %v263 = vld [vmem:[#allocation9 + $0x34] sm:$0xf]
    %v264 = vld [vmem:[#allocation9 + $0x38] sm:$0xf]
    %v265 = vld [vmem:[#allocation9 + $0x3c] sm:$0xf]
    %v282 = vunpack.c.l.b16 %v250
    %v283 = vunpack.c.l.b16 %v251
    %v284 = vunpack.c.l.b16 %v252
    %v285 = vunpack.c.l.b16 %v253
    %v286 = vunpack.c.l.b16 %v254
    %v287 = vunpack.c.l.b16 %v255
    %v288 = vunpack.c.l.b16 %v256
    %v289 = vunpack.c.l.b16 %v257
    %v290 = vunpack.c.l.b16 %v258
    %v291 = vunpack.c.l.b16 %v259
    %v292 = vunpack.c.l.b16 %v260
    %v293 = vunpack.c.l.b16 %v261
    %v294 = vunpack.c.l.b16 %v262
    %v295 = vunpack.c.l.b16 %v263
    %v296 = vunpack.c.l.b16 %v264
    %v297 = vunpack.c.l.b16 %v265
    %v298 = vpack.c.b16 %v283, %v282
    %v299 = vpack.c.b16 %v285, %v284
    %v300 = vpack.c.b16 %v287, %v286
    %v301 = vpack.c.b16 %v289, %v288
    %v302 = vpack.c.b16 %v291, %v290
    %v303 = vpack.c.b16 %v293, %v292
    %v304 = vpack.c.b16 %v295, %v294
    %v305 = vpack.c.b16 %v297, %v296
    %314 = vmatprep.subr.bf16.mxu0 0
    %315 = vmatpush1.bf16.msra.mxu0 %v298
    %316 = vmatprep.subr.bf16.mxu0 0
    %317 = vmatpush1.bf16.msra.mxu0 %v299
    %318 = vmatprep.subr.bf16.mxu0 0
    %319 = vmatpush1.bf16.msra.mxu0 %v300
    %320 = vmatprep.subr.bf16.mxu0 0
    %321 = vmatpush1.bf16.msra.mxu0 %v301
    %322 = vmatprep.subr.bf16.mxu0 0
    %323 = vmatpush1.bf16.msra.mxu0 %v302
    %324 = vmatprep.subr.bf16.mxu0 0
    %325 = vmatpush1.bf16.msra.mxu0 %v303
    %326 = vmatprep.subr.bf16.mxu0 0
    %327 = vmatpush1.bf16.msra.mxu0 %v304
    %328 = vmatprep.subr.bf16.mxu0 0
    %329 = vmatpush1.bf16.msra.mxu0 %v305
    %330 = vmatprep.subr.bf16.mxu0 0
    %331 = vmatpush1.bf16.msra.mxu0 0
    %332 = vmatprep.subr.bf16.mxu0 0
    %333 = vmatpush1.bf16.msra.mxu0 0
    %334 = vmatprep.subr.bf16.mxu0 0
    %335 = vmatpush1.bf16.msra.mxu0 0
    %336 = vmatprep.subr.bf16.mxu0 0
    %337 = vmatpush1.bf16.msra.mxu0 0
    %338 = vmatprep.subr.bf16.mxu0 0
    %339 = vmatpush1.bf16.msra.mxu0 0
    %340 = vmatprep.subr.bf16.mxu0 0
    %341 = vmatpush1.bf16.msra.mxu0 0
    %342 = vmatprep.subr.bf16.mxu0 0
    %343 = vmatpush1.bf16.msra.mxu0 0
    %344 = vmatprep.subr.bf16.mxu0 0
    %345 = vmatpush1.bf16.msra.mxu0 0
    %346 = vmatprep.mubr.bf16.mxu0 0
    %347 = vmatmul.mubr.bf16.gmra.mrb[0].mxu0 %v249
    %v348 = vpop.f32.mrb[0].mxu0
    %v349 = vadd.f32 0.0, %v348
    %v350 = vpop.f32.mrb[0].mxu0
    %v351 = vpop.f32.mrb[0].mxu0
    %v352 = vpop.f32.mrb[0].mxu0
    %353 = vdwg.mxu0
    %v355 = vrot.slane %v349, 1
    %v356 = vrot.slane %v349, 2
    %v357 = vrot.slane %v349, 3
    %v358 = vrot.slane %v349, 4
    %v359 = vrot.slane %v349, 5
    %v360 = vrot.slane %v349, 6
    %v361 = vrot.slane %v349, 7
    %v370 = vadd.f32 %v241, %v349
    %v371 = vadd.f32 %v242, %v355
    %v372 = vadd.f32 %v243, %v356
    %v373 = vadd.f32 %v244, %v357
    %v374 = vadd.f32 %v245, %v358
    %v375 = vadd.f32 %v246, %v359
    %v376 = vadd.f32 %v247, %v360
    %v377 = vadd.f32 %v248, %v361
    %v378 = vtanh.pop %v370
    %v379 = vtanh.pop %v371
    %v380 = vtanh.pop %v372
    %v381 = vtanh.pop %v373
    %v382 = vtanh.pop %v374
    %v383 = vtanh.pop %v375
    %v384 = vtanh.pop %v376
    %v385 = vtanh.pop %v377
    %386 = vst [vmem:[#allocation2] sm:$0x1] %v378
    %387 = vst [vmem:[#allocation2 + $0x8] sm:$0x1] %v379
    %388 = vst [vmem:[#allocation2 + $0x10] sm:$0x1] %v380
    %389 = vst [vmem:[#allocation2 + $0x18] sm:$0x1] %v381
    %390 = vst [vmem:[#allocation2 + $0x20] sm:$0x1] %v382
    %391 = vst [vmem:[#allocation2 + $0x28] sm:$0x1] %v383
    %392 = vst [vmem:[#allocation2 + $0x30] sm:$0x1] %v384
    %393 = vst [vmem:[#allocation2 + $0x38] sm:$0x1] %v385
    %v394 = vld [vmem:[#allocation2 + $0x1] sm:$0x1]
    %v395 = vld [vmem:[#allocation2 + $0x9] sm:$0x1]
    %v396 = vld [vmem:[#allocation2 + $0x11] sm:$0x1]
    %v397 = vld [vmem:[#allocation2 + $0x19] sm:$0x1]
    %v398 = vld [vmem:[#allocation2 + $0x21] sm:$0x1]
    %v399 = vld [vmem:[#allocation2 + $0x29] sm:$0x1]
    %v400 = vld [vmem:[#allocation2 + $0x31] sm:$0x1]
    %v401 = vld [vmem:[#allocation2 + $0x39] sm:$0x1]
    %v402 = vpack.c.bf16 %v378, %v378
    %v403 = vpack.c.bf16 %v379, %v379
    %v404 = vpack.c.bf16 %v380, %v380
    %v405 = vpack.c.bf16 %v381, %v381
    %v406 = vpack.c.bf16 %v382, %v382
    %v407 = vpack.c.bf16 %v383, %v383
    %v408 = vpack.c.bf16 %v384, %v384
    %v409 = vpack.c.bf16 %v385, %v385
    %v410 = vld [vmem:[#allocation9] sm:$0xf]
    %v411 = vld [vmem:[#allocation9 + $0x4] sm:$0xf]
    %v412 = vld [vmem:[#allocation9 + $0x8] sm:$0xf]
    %v413 = vld [vmem:[#allocation9 + $0xc] sm:$0xf]
    %v414 = vld [vmem:[#allocation9 + $0x10] sm:$0xf]
    %v415 = vld [vmem:[#allocation9 + $0x14] sm:$0xf]
    %v416 = vld [vmem:[#allocation9 + $0x18] sm:$0xf]
    %v417 = vld [vmem:[#allocation9 + $0x1c] sm:$0xf]
    %v418 = vld [vmem:[#allocation9 + $0x20] sm:$0xf]
    %v419 = vld [vmem:[#allocation9 + $0x24] sm:$0xf]
    %v420 = vld [vmem:[#allocation9 + $0x28] sm:$0xf]
    %v421 = vld [vmem:[#allocation9 + $0x2c] sm:$0xf]
    %v422 = vld [vmem:[#allocation9 + $0x30] sm:$0xf]
    %v423 = vld [vmem:[#allocation9 + $0x34] sm:$0xf]
    %v424 = vld [vmem:[#allocation9 + $0x38] sm:$0xf]
    %v425 = vld [vmem:[#allocation9 + $0x3c] sm:$0xf]
    %v434 = vunpack.c.l.b16 %v402
    %v435 = vunpack.c.l.b16 %v403
    %v436 = vunpack.c.l.b16 %v404
    %v437 = vunpack.c.l.b16 %v405
    %v438 = vunpack.c.l.b16 %v406
    %v439 = vunpack.c.l.b16 %v407
    %v440 = vunpack.c.l.b16 %v408
    %v441 = vunpack.c.l.b16 %v409
    %v442 = vrot.slane %v435, 7
    %vm443 = vcmask 1041409
    %v444 = vsel %vm443, %v442, %v434
    %v445 = vrot.slane %v436, 6
    %vm446 = vcmask 1042434
    %v447 = vsel %vm446, %v445, %v444
    %v448 = vrot.slane %v437, 5
    %vm449 = vcmask 1043459
    %v450 = vsel %vm449, %v448, %v447
    %v451 = vrot.slane %v438, 4
    %vm452 = vcmask 1044484
    %v453 = vsel %vm452, %v451, %v450
    %v454 = vrot.slane %v439, 3
    %vm455 = vcmask 1045509
    %v456 = vsel %vm455, %v454, %v453
    %v457 = vrot.slane %v440, 2
    %vm458 = vcmask 1046534
    %v459 = vsel %vm458, %v457, %v456
    %v460 = vrot.slane %v441, 1
    %vm461 = vcmask 1047559
    %v462 = vsel %vm461, %v460, %v459
    %v463 = vpack.c.b16 %v462, %v462
    %v481 = vunpack.c.l.b16 %v410
    %v482 = vunpack.c.l.b16 %v411
    %v483 = vunpack.c.l.b16 %v412
    %v484 = vunpack.c.l.b16 %v413
    %v485 = vunpack.c.l.b16 %v414
    %v486 = vunpack.c.l.b16 %v415
    %v487 = vunpack.c.l.b16 %v416
    %v488 = vunpack.c.l.b16 %v417
    %v489 = vunpack.c.l.b16 %v418
    %v490 = vunpack.c.l.b16 %v419
    %v491 = vunpack.c.l.b16 %v420
    %v492 = vunpack.c.l.b16 %v421
    %v493 = vunpack.c.l.b16 %v422
    %v494 = vunpack.c.l.b16 %v423
    %v495 = vunpack.c.l.b16 %v424
    %v496 = vunpack.c.l.b16 %v425
    %v497 = vpack.c.b16 %v482, %v481
    %v498 = vpack.c.b16 %v484, %v483
    %v499 = vpack.c.b16 %v486, %v485
    %v500 = vpack.c.b16 %v488, %v487
    %v501 = vpack.c.b16 %v490, %v489
    %v502 = vpack.c.b16 %v492, %v491
    %v503 = vpack.c.b16 %v494, %v493
    %v504 = vpack.c.b16 %v496, %v495
    %513 = vmatprep.subr.bf16.mxu0 0
    %514 = vmatpush1.bf16.msra.mxu0 %v497
    %515 = vmatprep.subr.bf16.mxu0 0
    %516 = vmatpush1.bf16.msra.mxu0 %v498
    %517 = vmatprep.subr.bf16.mxu0 0
    %518 = vmatpush1.bf16.msra.mxu0 %v499
    %519 = vmatprep.subr.bf16.mxu0 0
    %520 = vmatpush1.bf16.msra.mxu0 %v500
    %521 = vmatprep.subr.bf16.mxu0 0
    %522 = vmatpush1.bf16.msra.mxu0 %v501
    %523 = vmatprep.subr.bf16.mxu0 0
    %524 = vmatpush1.bf16.msra.mxu0 %v502
    %525 = vmatprep.subr.bf16.mxu0 0
    %526 = vmatpush1.bf16.msra.mxu0 %v503
    %527 = vmatprep.subr.bf16.mxu0 0
    %528 = vmatpush1.bf16.msra.mxu0 %v504
    %529 = vmatprep.subr.bf16.mxu0 0
    %530 = vmatpush1.bf16.msra.mxu0 0
    %531 = vmatprep.subr.bf16.mxu0 0
    %532 = vmatpush1.bf16.msra.mxu0 0
    %533 = vmatprep.subr.bf16.mxu0 0
    %534 = vmatpush1.bf16.msra.mxu0 0
    %535 = vmatprep.subr.bf16.mxu0 0
    %536 = vmatpush1.bf16.msra.mxu0 0
    %537 = vmatprep.subr.bf16.mxu0 0
    %538 = vmatpush1.bf16.msra.mxu0 0
    %539 = vmatprep.subr.bf16.mxu0 0
    %540 = vmatpush1.bf16.msra.mxu0 0
    %541 = vmatprep.subr.bf16.mxu0 0
    %542 = vmatpush1.bf16.msra.mxu0 0
    %543 = vmatprep.subr.bf16.mxu0 0
    %544 = vmatpush1.bf16.msra.mxu0 0
    %545 = vmatprep.mubr.bf16.mxu0 0
    %546 = vmatmul.mubr.bf16.gmra.mrb[0].mxu0 %v463
    %v547 = vpop.f32.mrb[0].mxu0
    %v548 = vadd.f32 0.0, %v547
    %v549 = vpop.f32.mrb[0].mxu0
    %v550 = vpop.f32.mrb[0].mxu0
    %v551 = vpop.f32.mrb[0].mxu0
    %552 = vdwg.mxu0
    %v554 = vrot.slane %v548, 1
    %v555 = vrot.slane %v548, 2
    %v556 = vrot.slane %v548, 3
    %v557 = vrot.slane %v548, 4
    %v558 = vrot.slane %v548, 5
    %v559 = vrot.slane %v548, 6
    %v560 = vrot.slane %v548, 7
    %v569 = vadd.f32 %v394, %v548
    %v570 = vadd.f32 %v395, %v554
    %v571 = vadd.f32 %v396, %v555
    %v572 = vadd.f32 %v397, %v556
    %v573 = vadd.f32 %v398, %v557
    %v574 = vadd.f32 %v399, %v558
    %v575 = vadd.f32 %v400, %v559
    %v576 = vadd.f32 %v401, %v560
    %v577 = vtanh.pop %v569
    %v578 = vtanh.pop %v570
    %v579 = vtanh.pop %v571
    %v580 = vtanh.pop %v572
    %v581 = vtanh.pop %v573
    %v582 = vtanh.pop %v574
    %v583 = vtanh.pop %v575
    %v584 = vtanh.pop %v576
    %585 = vst [vmem:[#allocation2 + $0x1] sm:$0x1] %v577
    %586 = vst [vmem:[#allocation2 + $0x9] sm:$0x1] %v578
    %587 = vst [vmem:[#allocation2 + $0x11] sm:$0x1] %v579
    %588 = vst [vmem:[#allocation2 + $0x19] sm:$0x1] %v580
    %589 = vst [vmem:[#allocation2 + $0x21] sm:$0x1] %v581
    %590 = vst [vmem:[#allocation2 + $0x29] sm:$0x1] %v582
    %591 = vst [vmem:[#allocation2 + $0x31] sm:$0x1] %v583
    %592 = vst [vmem:[#allocation2 + $0x39] sm:$0x1] %v584
    %v593 = vld [vmem:[#allocation2 + $0x2] sm:$0x1]
    %v594 = vld [vmem:[#allocation2 + $0xa] sm:$0x1]
    %v595 = vld [vmem:[#allocation2 + $0x12] sm:$0x1]
    %v596 = vld [vmem:[#allocation2 + $0x1a] sm:$0x1]
    %v597 = vld [vmem:[#allocation2 + $0x22] sm:$0x1]
    %v598 = vld [vmem:[#allocation2 + $0x2a] sm:$0x1]
    %v599 = vld [vmem:[#allocation2 + $0x32] sm:$0x1]
    %v600 = vld [vmem:[#allocation2 + $0x3a] sm:$0x1]
    %v601 = vpack.c.bf16 %v577, %v577
    %v602 = vpack.c.bf16 %v578, %v578
    %v603 = vpack.c.bf16 %v579, %v579
    %v604 = vpack.c.bf16 %v580, %v580
    %v605 = vpack.c.bf16 %v581, %v581
    %v606 = vpack.c.bf16 %v582, %v582
    %v607 = vpack.c.bf16 %v583, %v583
    %v608 = vpack.c.bf16 %v584, %v584
    %v609 = vld [vmem:[#allocation9] sm:$0xf]
    %v610 = vld [vmem:[#allocation9 + $0x4] sm:$0xf]
    %v611 = vld [vmem:[#allocation9 + $0x8] sm:$0xf]
    %v612 = vld [vmem:[#allocation9 + $0xc] sm:$0xf]
    %v613 = vld [vmem:[#allocation9 + $0x10] sm:$0xf]
    %v614 = vld [vmem:[#allocation9 + $0x14] sm:$0xf]
    %v615 = vld [vmem:[#allocation9 + $0x18] sm:$0xf]
    %v616 = vld [vmem:[#allocation9 + $0x1c] sm:$0xf]
    %v617 = vld [vmem:[#allocation9 + $0x20] sm:$0xf]
    %v618 = vld [vmem:[#allocation9 + $0x24] sm:$0xf]
    %v619 = vld [vmem:[#allocation9 + $0x28] sm:$0xf]
    %v620 = vld [vmem:[#allocation9 + $0x2c] sm:$0xf]
    %v621 = vld [vmem:[#allocation9 + $0x30] sm:$0xf]
    %v622 = vld [vmem:[#allocation9 + $0x34] sm:$0xf]
    %v623 = vld [vmem:[#allocation9 + $0x38] sm:$0xf]
    %v624 = vld [vmem:[#allocation9 + $0x3c] sm:$0xf]
    %v633 = vunpack.c.l.b16 %v601
    %v634 = vunpack.c.l.b16 %v602
    %v635 = vunpack.c.l.b16 %v603
    %v636 = vunpack.c.l.b16 %v604
    %v637 = vunpack.c.l.b16 %v605
    %v638 = vunpack.c.l.b16 %v606
    %v639 = vunpack.c.l.b16 %v607
    %v640 = vunpack.c.l.b16 %v608
    %v641 = vrot.slane %v634, 7
    %v642 = vsel %vm443, %v641, %v633
    %v643 = vrot.slane %v635, 6
    %v644 = vsel %vm446, %v643, %v642
    %v645 = vrot.slane %v636, 5
    %v646 = vsel %vm449, %v645, %v644
    %v647 = vrot.slane %v637, 4
    %v648 = vsel %vm452, %v647, %v646
    %v649 = vrot.slane %v638, 3
    %v650 = vsel %vm455, %v649, %v648
    %v651 = vrot.slane %v639, 2
    %v652 = vsel %vm458, %v651, %v650
    %v653 = vrot.slane %v640, 1
    %v654 = vsel %vm461, %v653, %v652
    %v655 = vpack.c.b16 %v654, %v654
    %v673 = vunpack.c.l.b16 %v609
    %v674 = vunpack.c.l.b16 %v610
    %v675 = vunpack.c.l.b16 %v611
    %v676 = vunpack.c.l.b16 %v612
    %v677 = vunpack.c.l.b16 %v613
    %v678 = vunpack.c.l.b16 %v614
    %v679 = vunpack.c.l.b16 %v615
    %v680 = vunpack.c.l.b16 %v616
    %v681 = vunpack.c.l.b16 %v617
    %v682 = vunpack.c.l.b16 %v618
    %v683 = vunpack.c.l.b16 %v619
    %v684 = vunpack.c.l.b16 %v620
    %v685 = vunpack.c.l.b16 %v621
    %v686 = vunpack.c.l.b16 %v622
    %v687 = vunpack.c.l.b16 %v623
    %v688 = vunpack.c.l.b16 %v624
    %v689 = vpack.c.b16 %v674, %v673
    %v690 = vpack.c.b16 %v676, %v675
    %v691 = vpack.c.b16 %v678, %v677
    %v692 = vpack.c.b16 %v680, %v679
    %v693 = vpack.c.b16 %v682, %v681
    %v694 = vpack.c.b16 %v684, %v683
    %v695 = vpack.c.b16 %v686, %v685
    %v696 = vpack.c.b16 %v688, %v687
    %705 = vmatprep.subr.bf16.mxu0 0
    %706 = vmatpush1.bf16.msra.mxu0 %v689
    %707 = vmatprep.subr.bf16.mxu0 0
    %708 = vmatpush1.bf16.msra.mxu0 %v690
    %709 = vmatprep.subr.bf16.mxu0 0
    %710 = vmatpush1.bf16.msra.mxu0 %v691
    %711 = vmatprep.subr.bf16.mxu0 0
    %712 = vmatpush1.bf16.msra.mxu0 %v692
    %713 = vmatprep.subr.bf16.mxu0 0
    %714 = vmatpush1.bf16.msra.mxu0 %v693
    %715 = vmatprep.subr.bf16.mxu0 0
    %716 = vmatpush1.bf16.msra.mxu0 %v694
    %717 = vmatprep.subr.bf16.mxu0 0
    %718 = vmatpush1.bf16.msra.mxu0 %v695
    %719 = vmatprep.subr.bf16.mxu0 0
    %720 = vmatpush1.bf16.msra.mxu0 %v696
    %721 = vmatprep.subr.bf16.mxu0 0
    %722 = vmatpush1.bf16.msra.mxu0 0
    %723 = vmatprep.subr.bf16.mxu0 0
    %724 = vmatpush1.bf16.msra.mxu0 0
    %725 = vmatprep.subr.bf16.mxu0 0
    %726 = vmatpush1.bf16.msra.mxu0 0
    %727 = vmatprep.subr.bf16.mxu0 0
    %728 = vmatpush1.bf16.msra.mxu0 0
    %729 = vmatprep.subr.bf16.mxu0 0
    %730 = vmatpush1.bf16.msra.mxu0 0
    %731 = vmatprep.subr.bf16.mxu0 0
    %732 = vmatpush1.bf16.msra.mxu0 0
    %733 = vmatprep.subr.bf16.mxu0 0
    %734 = vmatpush1.bf16.msra.mxu0 0
    %735 = vmatprep.subr.bf16.mxu0 0
    %736 = vmatpush1.bf16.msra.mxu0 0
    %737 = vmatprep.mubr.bf16.mxu0 0
    %738 = vmatmul.mubr.bf16.gmra.mrb[0].mxu0 %v655
    %v739 = vpop.f32.mrb[0].mxu0
    %v740 = vadd.f32 0.0, %v739
    %v741 = vpop.f32.mrb[0].mxu0
    %v742 = vpop.f32.mrb[0].mxu0
    %v743 = vpop.f32.mrb[0].mxu0
    %744 = vdwg.mxu0
    %v746 = vrot.slane %v740, 1
    %v747 = vrot.slane %v740, 2
    %v748 = vrot.slane %v740, 3
    %v749 = vrot.slane %v740, 4
    %v750 = vrot.slane %v740, 5
    %v751 = vrot.slane %v740, 6
    %v752 = vrot.slane %v740, 7
    %v761 = vadd.f32 %v593, %v740
    %v762 = vadd.f32 %v594, %v746
    %v763 = vadd.f32 %v595, %v747
    %v764 = vadd.f32 %v596, %v748
    %v765 = vadd.f32 %v597, %v749
    %v766 = vadd.f32 %v598, %v750
    %v767 = vadd.f32 %v599, %v751
    %v768 = vadd.f32 %v600, %v752
    %v769 = vtanh.pop %v761
    %v770 = vtanh.pop %v762
    %v771 = vtanh.pop %v763
    %v772 = vtanh.pop %v764
    %v773 = vtanh.pop %v765
    %v774 = vtanh.pop %v766
    %v775 = vtanh.pop %v767
    %v776 = vtanh.pop %v768
    %777 = vst [vmem:[#allocation2 + $0x2] sm:$0x1] %v769
    %778 = vst [vmem:[#allocation2 + $0xa] sm:$0x1] %v770
    %779 = vst [vmem:[#allocation2 + $0x12] sm:$0x1] %v771
    %780 = vst [vmem:[#allocation2 + $0x1a] sm:$0x1] %v772
    %781 = vst [vmem:[#allocation2 + $0x22] sm:$0x1] %v773
    %782 = vst [vmem:[#allocation2 + $0x2a] sm:$0x1] %v774
    %783 = vst [vmem:[#allocation2 + $0x32] sm:$0x1] %v775
    %784 = vst [vmem:[#allocation2 + $0x3a] sm:$0x1] %v776
    %v785 = vld [vmem:[#allocation2 + $0x3] sm:$0x1]
    %v786 = vld [vmem:[#allocation2 + $0xb] sm:$0x1]
    %v787 = vld [vmem:[#allocation2 + $0x13] sm:$0x1]
    %v788 = vld [vmem:[#allocation2 + $0x1b] sm:$0x1]
    %v789 = vld [vmem:[#allocation2 + $0x23] sm:$0x1]
    %v790 = vld [vmem:[#allocation2 + $0x2b] sm:$0x1]
    %v791 = vld [vmem:[#allocation2 + $0x33] sm:$0x1]
    %v792 = vld [vmem:[#allocation2 + $0x3b] sm:$0x1]
    %v793 = vpack.c.bf16 %v769, %v769
    %v794 = vpack.c.bf16 %v770, %v770
    %v795 = vpack.c.bf16 %v771, %v771
    %v796 = vpack.c.bf16 %v772, %v772
    %v797 = vpack.c.bf16 %v773, %v773
    %v798 = vpack.c.bf16 %v774, %v774
    %v799 = vpack.c.bf16 %v775, %v775
    %v800 = vpack.c.bf16 %v776, %v776
    %v801 = vld [vmem:[#allocation9] sm:$0xf]
    %v802 = vld [vmem:[#allocation9 + $0x4] sm:$0xf]
    %v803 = vld [vmem:[#allocation9 + $0x8] sm:$0xf]
    %v804 = vld [vmem:[#allocation9 + $0xc] sm:$0xf]
    %v805 = vld [vmem:[#allocation9 + $0x10] sm:$0xf]
    %v806 = vld [vmem:[#allocation9 + $0x14] sm:$0xf]
    %v807 = vld [vmem:[#allocation9 + $0x18] sm:$0xf]
    %v808 = vld [vmem:[#allocation9 + $0x1c] sm:$0xf]
    %v809 = vld [vmem:[#allocation9 + $0x20] sm:$0xf]
    %v810 = vld [vmem:[#allocation9 + $0x24] sm:$0xf]
    %v811 = vld [vmem:[#allocation9 + $0x28] sm:$0xf]
    %v812 = vld [vmem:[#allocation9 + $0x2c] sm:$0xf]
    %v813 = vld [vmem:[#allocation9 + $0x30] sm:$0xf]
    %v814 = vld [vmem:[#allocation9 + $0x34] sm:$0xf]
    %v815 = vld [vmem:[#allocation9 + $0x38] sm:$0xf]
    %v816 = vld [vmem:[#allocation9 + $0x3c] sm:$0xf]
    %v825 = vunpack.c.l.b16 %v793
    %v826 = vunpack.c.l.b16 %v794
    %v827 = vunpack.c.l.b16 %v795
    %v828 = vunpack.c.l.b16 %v796
    %v829 = vunpack.c.l.b16 %v797
    %v830 = vunpack.c.l.b16 %v798
    %v831 = vunpack.c.l.b16 %v799
    %v832 = vunpack.c.l.b16 %v800
    %v833 = vrot.slane %v826, 7
    %v834 = vsel %vm443, %v833, %v825
    %v835 = vrot.slane %v827, 6
    %v836 = vsel %vm446, %v835, %v834
    %v837 = vrot.slane %v828, 5
    %v838 = vsel %vm449, %v837, %v836
    %v839 = vrot.slane %v829, 4
    %v840 = vsel %vm452, %v839, %v838
    %v841 = vrot.slane %v830, 3
    %v842 = vsel %vm455, %v841, %v840
    %v843 = vrot.slane %v831, 2
    %v844 = vsel %vm458, %v843, %v842
    %v845 = vrot.slane %v832, 1
    %v846 = vsel %vm461, %v845, %v844
    %v847 = vpack.c.b16 %v846, %v846
    %v865 = vunpack.c.l.b16 %v801
    %v866 = vunpack.c.l.b16 %v802
    %v867 = vunpack.c.l.b16 %v803
    %v868 = vunpack.c.l.b16 %v804
    %v869 = vunpack.c.l.b16 %v805
    %v870 = vunpack.c.l.b16 %v806
    %v871 = vunpack.c.l.b16 %v807
    %v872 = vunpack.c.l.b16 %v808
    %v873 = vunpack.c.l.b16 %v809
    %v874 = vunpack.c.l.b16 %v810
    %v875 = vunpack.c.l.b16 %v811
    %v876 = vunpack.c.l.b16 %v812
    %v877 = vunpack.c.l.b16 %v813
    %v878 = vunpack.c.l.b16 %v814
    %v879 = vunpack.c.l.b16 %v815
    %v880 = vunpack.c.l.b16 %v816
    %v881 = vpack.c.b16 %v866, %v865
    %v882 = vpack.c.b16 %v868, %v867
    %v883 = vpack.c.b16 %v870, %v869
    %v884 = vpack.c.b16 %v872, %v871
    %v885 = vpack.c.b16 %v874, %v873
    %v886 = vpack.c.b16 %v876, %v875
    %v887 = vpack.c.b16 %v878, %v877
    %v888 = vpack.c.b16 %v880, %v879
    %897 = vmatprep.subr.bf16.mxu0 0
    %898 = vmatpush1.bf16.msra.mxu0 %v881
    %899 = vmatprep.subr.bf16.mxu0 0
    %900 = vmatpush1.bf16.msra.mxu0 %v882
    %901 = vmatprep.subr.bf16.mxu0 0
    %902 = vmatpush1.bf16.msra.mxu0 %v883
    %903 = vmatprep.subr.bf16.mxu0 0
    %904 = vmatpush1.bf16.msra.mxu0 %v884
    %905 = vmatprep.subr.bf16.mxu0 0
    %906 = vmatpush1.bf16.msra.mxu0 %v885
    %907 = vmatprep.subr.bf16.mxu0 0
    %908 = vmatpush1.bf16.msra.mxu0 %v886
    %909 = vmatprep.subr.bf16.mxu0 0
    %910 = vmatpush1.bf16.msra.mxu0 %v887
    %911 = vmatprep.subr.bf16.mxu0 0
    %912 = vmatpush1.bf16.msra.mxu0 %v888
    %913 = vmatprep.subr.bf16.mxu0 0
    %914 = vmatpush1.bf16.msra.mxu0 0
    %915 = vmatprep.subr.bf16.mxu0 0
    %916 = vmatpush1.bf16.msra.mxu0 0
    %917 = vmatprep.subr.bf16.mxu0 0
    %918 = vmatpush1.bf16.msra.mxu0 0
    %919 = vmatprep.subr.bf16.mxu0 0
    %920 = vmatpush1.bf16.msra.mxu0 0
    %921 = vmatprep.subr.bf16.mxu0 0
    %922 = vmatpush1.bf16.msra.mxu0 0
    %923 = vmatprep.subr.bf16.mxu0 0
    %924 = vmatpush1.bf16.msra.mxu0 0
    %925 = vmatprep.subr.bf16.mxu0 0
    %926 = vmatpush1.bf16.msra.mxu0 0
    %927 = vmatprep.subr.bf16.mxu0 0
    %928 = vmatpush1.bf16.msra.mxu0 0
    %929 = vmatprep.mubr.bf16.mxu0 0
    %930 = vmatmul.mubr.bf16.gmra.mrb[0].mxu0 %v847
    %v931 = vpop.f32.mrb[0].mxu0
    %v932 = vadd.f32 0.0, %v931
    %v933 = vpop.f32.mrb[0].mxu0
    %v934 = vpop.f32.mrb[0].mxu0
    %v935 = vpop.f32.mrb[0].mxu0
    %936 = vdwg.mxu0
    %v938 = vrot.slane %v932, 1
    %v939 = vrot.slane %v932, 2
    %v940 = vrot.slane %v932, 3
    %v941 = vrot.slane %v932, 4
    %v942 = vrot.slane %v932, 5
    %v943 = vrot.slane %v932, 6
    %v944 = vrot.slane %v932, 7
    %v953 = vadd.f32 %v785, %v932
    %v954 = vadd.f32 %v786, %v938
    %v955 = vadd.f32 %v787, %v939
    %v956 = vadd.f32 %v788, %v940
    %v957 = vadd.f32 %v789, %v941
    %v958 = vadd.f32 %v790, %v942
    %v959 = vadd.f32 %v791, %v943
    %v960 = vadd.f32 %v792, %v944
    %v961 = vtanh.pop %v953
    %v962 = vtanh.pop %v954
    %v963 = vtanh.pop %v955
    %v964 = vtanh.pop %v956
    %v965 = vtanh.pop %v957
    %v966 = vtanh.pop %v958
    %v967 = vtanh.pop %v959
    %v968 = vtanh.pop %v960
    %969 = vst [vmem:[#allocation2 + $0x3] sm:$0x1] %v961
    %970 = vst [vmem:[#allocation2 + $0xb] sm:$0x1] %v962
    %971 = vst [vmem:[#allocation2 + $0x13] sm:$0x1] %v963
    %972 = vst [vmem:[#allocation2 + $0x1b] sm:$0x1] %v964
    %973 = vst [vmem:[#allocation2 + $0x23] sm:$0x1] %v965
    %974 = vst [vmem:[#allocation2 + $0x2b] sm:$0x1] %v966
    %975 = vst [vmem:[#allocation2 + $0x33] sm:$0x1] %v967
    %976 = vst [vmem:[#allocation2 + $0x3b] sm:$0x1] %v968
    %v977 = vld [vmem:[#allocation2 + $0x4] sm:$0x1]
    %v978 = vld [vmem:[#allocation2 + $0xc] sm:$0x1]
    %v979 = vld [vmem:[#allocation2 + $0x14] sm:$0x1]
    %v980 = vld [vmem:[#allocation2 + $0x1c] sm:$0x1]
    %v981 = vld [vmem:[#allocation2 + $0x24] sm:$0x1]
    %v982 = vld [vmem:[#allocation2 + $0x2c] sm:$0x1]
    %v983 = vld [vmem:[#allocation2 + $0x34] sm:$0x1]
    %v984 = vld [vmem:[#allocation2 + $0x3c] sm:$0x1]
    %v985 = vpack.c.bf16 %v961, %v961
    %v986 = vpack.c.bf16 %v962, %v962
    %v987 = vpack.c.bf16 %v963, %v963
    %v988 = vpack.c.bf16 %v964, %v964
    %v989 = vpack.c.bf16 %v965, %v965
    %v990 = vpack.c.bf16 %v966, %v966
    %v991 = vpack.c.bf16 %v967, %v967
    %v992 = vpack.c.bf16 %v968, %v968
    %v993 = vld [vmem:[#allocation9] sm:$0xf]
    %v994 = vld [vmem:[#allocation9 + $0x4] sm:$0xf]
    %v995 = vld [vmem:[#allocation9 + $0x8] sm:$0xf]
    %v996 = vld [vmem:[#allocation9 + $0xc] sm:$0xf]
    %v997 = vld [vmem:[#allocation9 + $0x10] sm:$0xf]
    %v998 = vld [vmem:[#allocation9 + $0x14] sm:$0xf]
    %v999 = vld [vmem:[#allocation9 + $0x18] sm:$0xf]
    %v1000 = vld [vmem:[#allocation9 + $0x1c] sm:$0xf]
    %v1001 = vld [vmem:[#allocation9 + $0x20] sm:$0xf]
    %v1002 = vld [vmem:[#allocation9 + $0x24] sm:$0xf]
    %v1003 = vld [vmem:[#allocation9 + $0x28] sm:$0xf]
    %v1004 = vld [vmem:[#allocation9 + $0x2c] sm:$0xf]
    %v1005 = vld [vmem:[#allocation9 + $0x30] sm:$0xf]
    %v1006 = vld [vmem:[#allocation9 + $0x34] sm:$0xf]
    %v1007 = vld [vmem:[#allocation9 + $0x38] sm:$0xf]
    %v1008 = vld [vmem:[#allocation9 + $0x3c] sm:$0xf]
    %v1017 = vunpack.c.l.b16 %v985
    %v1018 = vunpack.c.l.b16 %v986
    %v1019 = vunpack.c.l.b16 %v987
    %v1020 = vunpack.c.l.b16 %v988
    %v1021 = vunpack.c.l.b16 %v989
    %v1022 = vunpack.c.l.b16 %v990
    %v1023 = vunpack.c.l.b16 %v991
    %v1024 = vunpack.c.l.b16 %v992
    %v1025 = vrot.slane %v1018, 7
    %v1026 = vsel %vm443, %v1025, %v1017
    %v1027 = vrot.slane %v1019, 6
    %v1028 = vsel %vm446, %v1027, %v1026
    %v1029 = vrot.slane %v1020, 5
    %v1030 = vsel %vm449, %v1029, %v1028
    %v1031 = vrot.slane %v1021, 4
    %v1032 = vsel %vm452, %v1031, %v1030
    %v1033 = vrot.slane %v1022, 3
    %v1034 = vsel %vm455, %v1033, %v1032
    %v1035 = vrot.slane %v1023, 2
    %v1036 = vsel %vm458, %v1035, %v1034
    %v1037 = vrot.slane %v1024, 1
    %v1038 = vsel %vm461, %v1037, %v1036
    %v1039 = vpack.c.b16 %v1038, %v1038
    %v1057 = vunpack.c.l.b16 %v993
    %v1058 = vunpack.c.l.b16 %v994
    %v1059 = vunpack.c.l.b16 %v995
    %v1060 = vunpack.c.l.b16 %v996
    %v1061 = vunpack.c.l.b16 %v997
    %v1062 = vunpack.c.l.b16 %v998
    %v1063 = vunpack.c.l.b16 %v999
    %v1064 = vunpack.c.l.b16 %v1000
    %v1065 = vunpack.c.l.b16 %v1001
    %v1066 = vunpack.c.l.b16 %v1002
    %v1067 = vunpack.c.l.b16 %v1003
    %v1068 = vunpack.c.l.b16 %v1004
    %v1069 = vunpack.c.l.b16 %v1005
    %v1070 = vunpack.c.l.b16 %v1006
    %v1071 = vunpack.c.l.b16 %v1007
    %v1072 = vunpack.c.l.b16 %v1008
    %v1073 = vpack.c.b16 %v1058, %v1057
    %v1074 = vpack.c.b16 %v1060, %v1059
    %v1075 = vpack.c.b16 %v1062, %v1061
    %v1076 = vpack.c.b16 %v1064, %v1063
    %v1077 = vpack.c.b16 %v1066, %v1065
    %v1078 = vpack.c.b16 %v1068, %v1067
    %v1079 = vpack.c.b16 %v1070, %v1069
    %v1080 = vpack.c.b16 %v1072, %v1071
    %1089 = vmatprep.subr.bf16.mxu0 0
    %1090 = vmatpush1.bf16.msra.mxu0 %v1073
    %1091 = vmatprep.subr.bf16.mxu0 0
    %1092 = vmatpush1.bf16.msra.mxu0 %v1074
    %1093 = vmatprep.subr.bf16.mxu0 0
    %1094 = vmatpush1.bf16.msra.mxu0 %v1075
    %1095 = vmatprep.subr.bf16.mxu0 0
    %1096 = vmatpush1.bf16.msra.mxu0 %v1076
    %1097 = vmatprep.subr.bf16.mxu0 0
    %1098 = vmatpush1.bf16.msra.mxu0 %v1077
    %1099 = vmatprep.subr.bf16.mxu0 0
    %1100 = vmatpush1.bf16.msra.mxu0 %v1078
    %1101 = vmatprep.subr.bf16.mxu0 0
    %1102 = vmatpush1.bf16.msra.mxu0 %v1079
    %1103 = vmatprep.subr.bf16.mxu0 0
    %1104 = vmatpush1.bf16.msra.mxu0 %v1080
    %1105 = vmatprep.subr.bf16.mxu0 0
    %1106 = vmatpush1.bf16.msra.mxu0 0
    %1107 = vmatprep.subr.bf16.mxu0 0
    %1108 = vmatpush1.bf16.msra.mxu0 0
    %1109 = vmatprep.subr.bf16.mxu0 0
    %1110 = vmatpush1.bf16.msra.mxu0 0
    %1111 = vmatprep.subr.bf16.mxu0 0
    %1112 = vmatpush1.bf16.msra.mxu0 0
    %1113 = vmatprep.subr.bf16.mxu0 0
    %1114 = vmatpush1.bf16.msra.mxu0 0
    %1115 = vmatprep.subr.bf16.mxu0 0
    %1116 = vmatpush1.bf16.msra.mxu0 0
    %1117 = vmatprep.subr.bf16.mxu0 0
    %1118 = vmatpush1.bf16.msra.mxu0 0
    %1119 = vmatprep.subr.bf16.mxu0 0
    %1120 = vmatpush1.bf16.msra.mxu0 0
    %1121 = vmatprep.mubr.bf16.mxu0 0
    %1122 = vmatmul.mubr.bf16.gmra.mrb[0].mxu0 %v1039
    %v1123 = vpop.f32.mrb[0].mxu0
    %v1124 = vadd.f32 0.0, %v1123
    %v1125 = vpop.f32.mrb[0].mxu0
    %v1126 = vpop.f32.mrb[0].mxu0
    %v1127 = vpop.f32.mrb[0].mxu0
    %1128 = vdwg.mxu0
    %v1130 = vrot.slane %v1124, 1
    %v1131 = vrot.slane %v1124, 2
    %v1132 = vrot.slane %v1124, 3
    %v1133 = vrot.slane %v1124, 4
    %v1134 = vrot.slane %v1124, 5
    %v1135 = vrot.slane %v1124, 6
    %v1136 = vrot.slane %v1124, 7
    %v1145 = vadd.f32 %v977, %v1124
    %v1146 = vadd.f32 %v978, %v1130
    %v1147 = vadd.f32 %v979, %v1131
    %v1148 = vadd.f32 %v980, %v1132
    %v1149 = vadd.f32 %v981, %v1133
    %v1150 = vadd.f32 %v982, %v1134
    %v1151 = vadd.f32 %v983, %v1135
    %v1152 = vadd.f32 %v984, %v1136
    %v1153 = vtanh.pop %v1145
    %v1154 = vtanh.pop %v1146
    %v1155 = vtanh.pop %v1147
    %v1156 = vtanh.pop %v1148
    %v1157 = vtanh.pop %v1149
    %v1158 = vtanh.pop %v1150
    %v1159 = vtanh.pop %v1151
    %v1160 = vtanh.pop %v1152
    %1161 = vst [vmem:[#allocation2 + $0x4] sm:$0x1] %v1153
    %1162 = vst [vmem:[#allocation2 + $0xc] sm:$0x1] %v1154
    %1163 = vst [vmem:[#allocation2 + $0x14] sm:$0x1] %v1155
    %1164 = vst [vmem:[#allocation2 + $0x1c] sm:$0x1] %v1156
    %1165 = vst [vmem:[#allocation2 + $0x24] sm:$0x1] %v1157
    %1166 = vst [vmem:[#allocation2 + $0x2c] sm:$0x1] %v1158
    %1167 = vst [vmem:[#allocation2 + $0x34] sm:$0x1] %v1159
    %1168 = vst [vmem:[#allocation2 + $0x3c] sm:$0x1] %v1160
    %v1169 = vld [vmem:[#allocation2 + $0x5] sm:$0x1]
    %v1170 = vld [vmem:[#allocation2 + $0xd] sm:$0x1]
    %v1171 = vld [vmem:[#allocation2 + $0x15] sm:$0x1]
    %v1172 = vld [vmem:[#allocation2 + $0x1d] sm:$0x1]
    %v1173 = vld [vmem:[#allocation2 + $0x25] sm:$0x1]
    %v1174 = vld [vmem:[#allocation2 + $0x2d] sm:$0x1]
    %v1175 = vld [vmem:[#allocation2 + $0x35] sm:$0x1]
    %v1176 = vld [vmem:[#allocation2 + $0x3d] sm:$0x1]
    %v1177 = vpack.c.bf16 %v1153, %v1153
    %v1178 = vpack.c.bf16 %v1154, %v1154
    %v1179 = vpack.c.bf16 %v1155, %v1155
    %v1180 = vpack.c.bf16 %v1156, %v1156
    %v1181 = vpack.c.bf16 %v1157, %v1157
    %v1182 = vpack.c.bf16 %v1158, %v1158
    %v1183 = vpack.c.bf16 %v1159, %v1159
    %v1184 = vpack.c.bf16 %v1160, %v1160
    %v1185 = vld [vmem:[#allocation9] sm:$0xf]
    %v1186 = vld [vmem:[#allocation9 + $0x4] sm:$0xf]
    %v1187 = vld [vmem:[#allocation9 + $0x8] sm:$0xf]
    %v1188 = vld [vmem:[#allocation9 + $0xc] sm:$0xf]
    %v1189 = vld [vmem:[#allocation9 + $0x10] sm:$0xf]
    %v1190 = vld [vmem:[#allocation9 + $0x14] sm:$0xf]
    %v1191 = vld [vmem:[#allocation9 + $0x18] sm:$0xf]
    %v1192 = vld [vmem:[#allocation9 + $0x1c] sm:$0xf]
    %v1193 = vld [vmem:[#allocation9 + $0x20] sm:$0xf]
    %v1194 = vld [vmem:[#allocation9 + $0x24] sm:$0xf]
    %v1195 = vld [vmem:[#allocation9 + $0x28] sm:$0xf]
    %v1196 = vld [vmem:[#allocation9 + $0x2c] sm:$0xf]
    %v1197 = vld [vmem:[#allocation9 + $0x30] sm:$0xf]
    %v1198 = vld [vmem:[#allocation9 + $0x34] sm:$0xf]
    %v1199 = vld [vmem:[#allocation9 + $0x38] sm:$0xf]
    %v1200 = vld [vmem:[#allocation9 + $0x3c] sm:$0xf]
    %v1209 = vunpack.c.l.b16 %v1177
    %v1210 = vunpack.c.l.b16 %v1178
    %v1211 = vunpack.c.l.b16 %v1179
    %v1212 = vunpack.c.l.b16 %v1180
    %v1213 = vunpack.c.l.b16 %v1181
    %v1214 = vunpack.c.l.b16 %v1182
    %v1215 = vunpack.c.l.b16 %v1183
    %v1216 = vunpack.c.l.b16 %v1184
    %v1217 = vrot.slane %v1210, 7
    %v1218 = vsel %vm443, %v1217, %v1209
    %v1219 = vrot.slane %v1211, 6
    %v1220 = vsel %vm446, %v1219, %v1218
    %v1221 = vrot.slane %v1212, 5
    %v1222 = vsel %vm449, %v1221, %v1220
    %v1223 = vrot.slane %v1213, 4
    %v1224 = vsel %vm452, %v1223, %v1222
    %v1225 = vrot.slane %v1214, 3
    %v1226 = vsel %vm455, %v1225, %v1224
    %v1227 = vrot.slane %v1215, 2
    %v1228 = vsel %vm458, %v1227, %v1226
    %v1229 = vrot.slane %v1216, 1
    %v1230 = vsel %vm461, %v1229, %v1228
    %v1231 = vpack.c.b16 %v1230, %v1230
    %v1249 = vunpack.c.l.b16 %v1185
    %v1250 = vunpack.c.l.b16 %v1186
    %v1251 = vunpack.c.l.b16 %v1187
    %v1252 = vunpack.c.l.b16 %v1188
    %v1253 = vunpack.c.l.b16 %v1189
    %v1254 = vunpack.c.l.b16 %v1190
    %v1255 = vunpack.c.l.b16 %v1191
    %v1256 = vunpack.c.l.b16 %v1192
    %v1257 = vunpack.c.l.b16 %v1193
    %v1258 = vunpack.c.l.b16 %v1194
    %v1259 = vunpack.c.l.b16 %v1195
    %v1260 = vunpack.c.l.b16 %v1196
    %v1261 = vunpack.c.l.b16 %v1197
    %v1262 = vunpack.c.l.b16 %v1198
    %v1263 = vunpack.c.l.b16 %v1199
    %v1264 = vunpack.c.l.b16 %v1200
    %v1265 = vpack.c.b16 %v1250, %v1249
    %v1266 = vpack.c.b16 %v1252, %v1251
    %v1267 = vpack.c.b16 %v1254, %v1253
    %v1268 = vpack.c.b16 %v1256, %v1255
    %v1269 = vpack.c.b16 %v1258, %v1257
    %v1270 = vpack.c.b16 %v1260, %v1259
    %v1271 = vpack.c.b16 %v1262, %v1261
    %v1272 = vpack.c.b16 %v1264, %v1263
    %1281 = vmatprep.subr.bf16.mxu0 0
    %1282 = vmatpush1.bf16.msra.mxu0 %v1265
    %1283 = vmatprep.subr.bf16.mxu0 0
    %1284 = vmatpush1.bf16.msra.mxu0 %v1266
    %1285 = vmatprep.subr.bf16.mxu0 0
    %1286 = vmatpush1.bf16.msra.mxu0 %v1267
    %1287 = vmatprep.subr.bf16.mxu0 0
    %1288 = vmatpush1.bf16.msra.mxu0 %v1268
    %1289 = vmatprep.subr.bf16.mxu0 0
    %1290 = vmatpush1.bf16.msra.mxu0 %v1269
    %1291 = vmatprep.subr.bf16.mxu0 0
    %1292 = vmatpush1.bf16.msra.mxu0 %v1270
    %1293 = vmatprep.subr.bf16.mxu0 0
    %1294 = vmatpush1.bf16.msra.mxu0 %v1271
    %1295 = vmatprep.subr.bf16.mxu0 0
    %1296 = vmatpush1.bf16.msra.mxu0 %v1272
    %1297 = vmatprep.subr.bf16.mxu0 0
    %1298 = vmatpush1.bf16.msra.mxu0 0
    %1299 = vmatprep.subr.bf16.mxu0 0
    %1300 = vmatpush1.bf16.msra.mxu0 0
    %1301 = vmatprep.subr.bf16.mxu0 0
    %1302 = vmatpush1.bf16.msra.mxu0 0
    %1303 = vmatprep.subr.bf16.mxu0 0
    %1304 = vmatpush1.bf16.msra.mxu0 0
    %1305 = vmatprep.subr.bf16.mxu0 0
    %1306 = vmatpush1.bf16.msra.mxu0 0
    %1307 = vmatprep.subr.bf16.mxu0 0
    %1308 = vmatpush1.bf16.msra.mxu0 0
    %1309 = vmatprep.subr.bf16.mxu0 0
    %1310 = vmatpush1.bf16.msra.mxu0 0
    %1311 = vmatprep.subr.bf16.mxu0 0
    %1312 = vmatpush1.bf16.msra.mxu0 0
    %1313 = vmatprep.mubr.bf16.mxu0 0
    %1314 = vmatmul.mubr.bf16.gmra.mrb[0].mxu0 %v1231
    %v1315 = vpop.f32.mrb[0].mxu0
    %v1316 = vadd.f32 0.0, %v1315
    %v1317 = vpop.f32.mrb[0].mxu0
    %v1318 = vpop.f32.mrb[0].mxu0
    %v1319 = vpop.f32.mrb[0].mxu0
    %1320 = vdwg.mxu0
    %v1322 = vrot.slane %v1316, 1
    %v1323 = vrot.slane %v1316, 2
    %v1324 = vrot.slane %v1316, 3
    %v1325 = vrot.slane %v1316, 4
    %v1326 = vrot.slane %v1316, 5
    %v1327 = vrot.slane %v1316, 6
    %v1328 = vrot.slane %v1316, 7
    %v1337 = vadd.f32 %v1169, %v1316
    %v1338 = vadd.f32 %v1170, %v1322
    %v1339 = vadd.f32 %v1171, %v1323
    %v1340 = vadd.f32 %v1172, %v1324
    %v1341 = vadd.f32 %v1173, %v1325
    %v1342 = vadd.f32 %v1174, %v1326
    %v1343 = vadd.f32 %v1175, %v1327
    %v1344 = vadd.f32 %v1176, %v1328
    %v1345 = vtanh.pop %v1337
    %v1346 = vtanh.pop %v1338
    %v1347 = vtanh.pop %v1339
    %v1348 = vtanh.pop %v1340
    %v1349 = vtanh.pop %v1341
    %v1350 = vtanh.pop %v1342
    %v1351 = vtanh.pop %v1343
    %v1352 = vtanh.pop %v1344
    %1353 = vst [vmem:[#allocation2 + $0x5] sm:$0x1] %v1345
    %1354 = vst [vmem:[#allocation2 + $0xd] sm:$0x1] %v1346
    %1355 = vst [vmem:[#allocation2 + $0x15] sm:$0x1] %v1347
    %1356 = vst [vmem:[#allocation2 + $0x1d] sm:$0x1] %v1348
    %1357 = vst [vmem:[#allocation2 + $0x25] sm:$0x1] %v1349
    %1358 = vst [vmem:[#allocation2 + $0x2d] sm:$0x1] %v1350
    %1359 = vst [vmem:[#allocation2 + $0x35] sm:$0x1] %v1351
    %1360 = vst [vmem:[#allocation2 + $0x3d] sm:$0x1] %v1352
    %v1361 = vld [vmem:[#allocation2 + $0x6] sm:$0x1]
    %v1362 = vld [vmem:[#allocation2 + $0xe] sm:$0x1]
    %v1363 = vld [vmem:[#allocation2 + $0x16] sm:$0x1]
    %v1364 = vld [vmem:[#allocation2 + $0x1e] sm:$0x1]
    %v1365 = vld [vmem:[#allocation2 + $0x26] sm:$0x1]
    %v1366 = vld [vmem:[#allocation2 + $0x2e] sm:$0x1]
    %v1367 = vld [vmem:[#allocation2 + $0x36] sm:$0x1]
    %v1368 = vld [vmem:[#allocation2 + $0x3e] sm:$0x1]
    %v1369 = vpack.c.bf16 %v1345, %v1345
    %v1370 = vpack.c.bf16 %v1346, %v1346
    %v1371 = vpack.c.bf16 %v1347, %v1347
    %v1372 = vpack.c.bf16 %v1348, %v1348
    %v1373 = vpack.c.bf16 %v1349, %v1349
    %v1374 = vpack.c.bf16 %v1350, %v1350
    %v1375 = vpack.c.bf16 %v1351, %v1351
    %v1376 = vpack.c.bf16 %v1352, %v1352
    %v1377 = vld [vmem:[#allocation9] sm:$0xf]
    %v1378 = vld [vmem:[#allocation9 + $0x4] sm:$0xf]
    %v1379 = vld [vmem:[#allocation9 + $0x8] sm:$0xf]
    %v1380 = vld [vmem:[#allocation9 + $0xc] sm:$0xf]
    %v1381 = vld [vmem:[#allocation9 + $0x10] sm:$0xf]
    %v1382 = vld [vmem:[#allocation9 + $0x14] sm:$0xf]
    %v1383 = vld [vmem:[#allocation9 + $0x18] sm:$0xf]
    %v1384 = vld [vmem:[#allocation9 + $0x1c] sm:$0xf]
    %v1385 = vld [vmem:[#allocation9 + $0x20] sm:$0xf]
    %v1386 = vld [vmem:[#allocation9 + $0x24] sm:$0xf]
    %v1387 = vld [vmem:[#allocation9 + $0x28] sm:$0xf]
    %v1388 = vld [vmem:[#allocation9 + $0x2c] sm:$0xf]
    %v1389 = vld [vmem:[#allocation9 + $0x30] sm:$0xf]
    %v1390 = vld [vmem:[#allocation9 + $0x34] sm:$0xf]
    %v1391 = vld [vmem:[#allocation9 + $0x38] sm:$0xf]
    %v1392 = vld [vmem:[#allocation9 + $0x3c] sm:$0xf]
    %v1401 = vunpack.c.l.b16 %v1369
    %v1402 = vunpack.c.l.b16 %v1370
    %v1403 = vunpack.c.l.b16 %v1371
    %v1404 = vunpack.c.l.b16 %v1372
    %v1405 = vunpack.c.l.b16 %v1373
    %v1406 = vunpack.c.l.b16 %v1374
    %v1407 = vunpack.c.l.b16 %v1375
    %v1408 = vunpack.c.l.b16 %v1376
    %v1409 = vrot.slane %v1402, 7
    %v1410 = vsel %vm443, %v1409, %v1401
    %v1411 = vrot.slane %v1403, 6
    %v1412 = vsel %vm446, %v1411, %v1410
    %v1413 = vrot.slane %v1404, 5
    %v1414 = vsel %vm449, %v1413, %v1412
    %v1415 = vrot.slane %v1405, 4
    %v1416 = vsel %vm452, %v1415, %v1414
    %v1417 = vrot.slane %v1406, 3
    %v1418 = vsel %vm455, %v1417, %v1416
    %v1419 = vrot.slane %v1407, 2
    %v1420 = vsel %vm458, %v1419, %v1418
    %v1421 = vrot.slane %v1408, 1
    %v1422 = vsel %vm461, %v1421, %v1420
    %v1423 = vpack.c.b16 %v1422, %v1422
    %v1441 = vunpack.c.l.b16 %v1377
    %v1442 = vunpack.c.l.b16 %v1378
    %v1443 = vunpack.c.l.b16 %v1379
    %v1444 = vunpack.c.l.b16 %v1380
    %v1445 = vunpack.c.l.b16 %v1381
    %v1446 = vunpack.c.l.b16 %v1382
    %v1447 = vunpack.c.l.b16 %v1383
    %v1448 = vunpack.c.l.b16 %v1384
    %v1449 = vunpack.c.l.b16 %v1385
    %v1450 = vunpack.c.l.b16 %v1386
    %v1451 = vunpack.c.l.b16 %v1387
    %v1452 = vunpack.c.l.b16 %v1388
    %v1453 = vunpack.c.l.b16 %v1389
    %v1454 = vunpack.c.l.b16 %v1390
    %v1455 = vunpack.c.l.b16 %v1391
    %v1456 = vunpack.c.l.b16 %v1392
    %v1457 = vpack.c.b16 %v1442, %v1441
    %v1458 = vpack.c.b16 %v1444, %v1443
    %v1459 = vpack.c.b16 %v1446, %v1445
    %v1460 = vpack.c.b16 %v1448, %v1447
    %v1461 = vpack.c.b16 %v1450, %v1449
    %v1462 = vpack.c.b16 %v1452, %v1451
    %v1463 = vpack.c.b16 %v1454, %v1453
    %v1464 = vpack.c.b16 %v1456, %v1455
    %1473 = vmatprep.subr.bf16.mxu0 0
    %1474 = vmatpush1.bf16.msra.mxu0 %v1457
    %1475 = vmatprep.subr.bf16.mxu0 0
    %1476 = vmatpush1.bf16.msra.mxu0 %v1458
    %1477 = vmatprep.subr.bf16.mxu0 0
    %1478 = vmatpush1.bf16.msra.mxu0 %v1459
    %1479 = vmatprep.subr.bf16.mxu0 0
    %1480 = vmatpush1.bf16.msra.mxu0 %v1460
    %1481 = vmatprep.subr.bf16.mxu0 0
    %1482 = vmatpush1.bf16.msra.mxu0 %v1461
    %1483 = vmatprep.subr.bf16.mxu0 0
    %1484 = vmatpush1.bf16.msra.mxu0 %v1462
    %1485 = vmatprep.subr.bf16.mxu0 0
    %1486 = vmatpush1.bf16.msra.mxu0 %v1463
    %1487 = vmatprep.subr.bf16.mxu0 0
    %1488 = vmatpush1.bf16.msra.mxu0 %v1464
    %1489 = vmatprep.subr.bf16.mxu0 0
    %1490 = vmatpush1.bf16.msra.mxu0 0
    %1491 = vmatprep.subr.bf16.mxu0 0
    %1492 = vmatpush1.bf16.msra.mxu0 0
    %1493 = vmatprep.subr.bf16.mxu0 0
    %1494 = vmatpush1.bf16.msra.mxu0 0
    %1495 = vmatprep.subr.bf16.mxu0 0
    %1496 = vmatpush1.bf16.msra.mxu0 0
    %1497 = vmatprep.subr.bf16.mxu0 0
    %1498 = vmatpush1.bf16.msra.mxu0 0
    %1499 = vmatprep.subr.bf16.mxu0 0
    %1500 = vmatpush1.bf16.msra.mxu0 0
    %1501 = vmatprep.subr.bf16.mxu0 0
    %1502 = vmatpush1.bf16.msra.mxu0 0
    %1503 = vmatprep.subr.bf16.mxu0 0
    %1504 = vmatpush1.bf16.msra.mxu0 0
    %1505 = vmatprep.mubr.bf16.mxu0 0
    %1506 = vmatmul.mubr.bf16.gmra.mrb[0].mxu0 %v1423
    %v1507 = vpop.f32.mrb[0].mxu0
    %v1508 = vadd.f32 0.0, %v1507
    %v1509 = vpop.f32.mrb[0].mxu0
    %v1510 = vpop.f32.mrb[0].mxu0
    %v1511 = vpop.f32.mrb[0].mxu0
    %1512 = vdwg.mxu0
    %v1514 = vrot.slane %v1508, 1
    %v1515 = vrot.slane %v1508, 2
    %v1516 = vrot.slane %v1508, 3
    %v1517 = vrot.slane %v1508, 4
    %v1518 = vrot.slane %v1508, 5
    %v1519 = vrot.slane %v1508, 6
    %v1520 = vrot.slane %v1508, 7
    %v1529 = vadd.f32 %v1361, %v1508
    %v1530 = vadd.f32 %v1362, %v1514
    %v1531 = vadd.f32 %v1363, %v1515
    %v1532 = vadd.f32 %v1364, %v1516
    %v1533 = vadd.f32 %v1365, %v1517
    %v1534 = vadd.f32 %v1366, %v1518
    %v1535 = vadd.f32 %v1367, %v1519
    %v1536 = vadd.f32 %v1368, %v1520
    %v1537 = vtanh.pop %v1529
    %v1538 = vtanh.pop %v1530
    %v1539 = vtanh.pop %v1531
    %v1540 = vtanh.pop %v1532
    %v1541 = vtanh.pop %v1533
    %v1542 = vtanh.pop %v1534
    %v1543 = vtanh.pop %v1535
    %v1544 = vtanh.pop %v1536
    %1545 = vst [vmem:[#allocation2 + $0x6] sm:$0x1] %v1537
    %1546 = vst [vmem:[#allocation2 + $0xe] sm:$0x1] %v1538
    %1547 = vst [vmem:[#allocation2 + $0x16] sm:$0x1] %v1539
    %1548 = vst [vmem:[#allocation2 + $0x1e] sm:$0x1] %v1540
    %1549 = vst [vmem:[#allocation2 + $0x26] sm:$0x1] %v1541
    %1550 = vst [vmem:[#allocation2 + $0x2e] sm:$0x1] %v1542
    %1551 = vst [vmem:[#allocation2 + $0x36] sm:$0x1] %v1543
    %1552 = vst [vmem:[#allocation2 + $0x3e] sm:$0x1] %v1544
    %v1553 = vld [vmem:[#allocation2 + $0x7] sm:$0x1]
    %v1554 = vld [vmem:[#allocation2 + $0xf] sm:$0x1]
    %v1555 = vld [vmem:[#allocation2 + $0x17] sm:$0x1]
    %v1556 = vld [vmem:[#allocation2 + $0x1f] sm:$0x1]
    %v1557 = vld [vmem:[#allocation2 + $0x27] sm:$0x1]
    %v1558 = vld [vmem:[#allocation2 + $0x2f] sm:$0x1]
    %v1559 = vld [vmem:[#allocation2 + $0x37] sm:$0x1]
    %v1560 = vld [vmem:[#allocation2 + $0x3f] sm:$0x1]
    %v1561 = vpack.c.bf16 %v1537, %v1537
    %v1562 = vpack.c.bf16 %v1538, %v1538
    %v1563 = vpack.c.bf16 %v1539, %v1539
    %v1564 = vpack.c.bf16 %v1540, %v1540
    %v1565 = vpack.c.bf16 %v1541, %v1541
    %v1566 = vpack.c.bf16 %v1542, %v1542
    %v1567 = vpack.c.bf16 %v1543, %v1543
    %v1568 = vpack.c.bf16 %v1544, %v1544
    %v1569 = vld [vmem:[#allocation9] sm:$0xf]
    %v1570 = vld [vmem:[#allocation9 + $0x4] sm:$0xf]
    %v1571 = vld [vmem:[#allocation9 + $0x8] sm:$0xf]
    %v1572 = vld [vmem:[#allocation9 + $0xc] sm:$0xf]
    %v1573 = vld [vmem:[#allocation9 + $0x10] sm:$0xf]
    %v1574 = vld [vmem:[#allocation9 + $0x14] sm:$0xf]
    %v1575 = vld [vmem:[#allocation9 + $0x18] sm:$0xf]
    %v1576 = vld [vmem:[#allocation9 + $0x1c] sm:$0xf]
    %v1577 = vld [vmem:[#allocation9 + $0x20] sm:$0xf]
    %v1578 = vld [vmem:[#allocation9 + $0x24] sm:$0xf]
    %v1579 = vld [vmem:[#allocation9 + $0x28] sm:$0xf]
    %v1580 = vld [vmem:[#allocation9 + $0x2c] sm:$0xf]
    %v1581 = vld [vmem:[#allocation9 + $0x30] sm:$0xf]
    %v1582 = vld [vmem:[#allocation9 + $0x34] sm:$0xf]
    %v1583 = vld [vmem:[#allocation9 + $0x38] sm:$0xf]
    %v1584 = vld [vmem:[#allocation9 + $0x3c] sm:$0xf]
    %v1593 = vunpack.c.l.b16 %v1561
    %v1594 = vunpack.c.l.b16 %v1562
    %v1595 = vunpack.c.l.b16 %v1563
    %v1596 = vunpack.c.l.b16 %v1564
    %v1597 = vunpack.c.l.b16 %v1565
    %v1598 = vunpack.c.l.b16 %v1566
    %v1599 = vunpack.c.l.b16 %v1567
    %v1600 = vunpack.c.l.b16 %v1568
    %v1601 = vrot.slane %v1594, 7
    %v1602 = vsel %vm443, %v1601, %v1593
    %v1603 = vrot.slane %v1595, 6
    %v1604 = vsel %vm446, %v1603, %v1602
    %v1605 = vrot.slane %v1596, 5
    %v1606 = vsel %vm449, %v1605, %v1604
    %v1607 = vrot.slane %v1597, 4
    %v1608 = vsel %vm452, %v1607, %v1606
    %v1609 = vrot.slane %v1598, 3
    %v1610 = vsel %vm455, %v1609, %v1608
    %v1611 = vrot.slane %v1599, 2
    %v1612 = vsel %vm458, %v1611, %v1610
    %v1613 = vrot.slane %v1600, 1
    %v1614 = vsel %vm461, %v1613, %v1612
    %v1615 = vpack.c.b16 %v1614, %v1614
    %v1633 = vunpack.c.l.b16 %v1569
    %v1634 = vunpack.c.l.b16 %v1570
    %v1635 = vunpack.c.l.b16 %v1571
    %v1636 = vunpack.c.l.b16 %v1572
    %v1637 = vunpack.c.l.b16 %v1573
    %v1638 = vunpack.c.l.b16 %v1574
    %v1639 = vunpack.c.l.b16 %v1575
    %v1640 = vunpack.c.l.b16 %v1576
    %v1641 = vunpack.c.l.b16 %v1577
    %v1642 = vunpack.c.l.b16 %v1578
    %v1643 = vunpack.c.l.b16 %v1579
    %v1644 = vunpack.c.l.b16 %v1580
    %v1645 = vunpack.c.l.b16 %v1581
    %v1646 = vunpack.c.l.b16 %v1582
    %v1647 = vunpack.c.l.b16 %v1583
    %v1648 = vunpack.c.l.b16 %v1584
    %v1649 = vpack.c.b16 %v1634, %v1633
    %v1650 = vpack.c.b16 %v1636, %v1635
    %v1651 = vpack.c.b16 %v1638, %v1637
    %v1652 = vpack.c.b16 %v1640, %v1639
    %v1653 = vpack.c.b16 %v1642, %v1641
    %v1654 = vpack.c.b16 %v1644, %v1643
    %v1655 = vpack.c.b16 %v1646, %v1645
    %v1656 = vpack.c.b16 %v1648, %v1647
    %1665 = vmatprep.subr.bf16.mxu0 0
    %1666 = vmatpush1.bf16.msra.mxu0 %v1649
    %1667 = vmatprep.subr.bf16.mxu0 0
    %1668 = vmatpush1.bf16.msra.mxu0 %v1650
    %1669 = vmatprep.subr.bf16.mxu0 0
    %1670 = vmatpush1.bf16.msra.mxu0 %v1651
    %1671 = vmatprep.subr.bf16.mxu0 0
    %1672 = vmatpush1.bf16.msra.mxu0 %v1652
    %1673 = vmatprep.subr.bf16.mxu0 0
    %1674 = vmatpush1.bf16.msra.mxu0 %v1653
    %1675 = vmatprep.subr.bf16.mxu0 0
    %1676 = vmatpush1.bf16.msra.mxu0 %v1654
    %1677 = vmatprep.subr.bf16.mxu0 0
    %1678 = vmatpush1.bf16.msra.mxu0 %v1655
    %1679 = vmatprep.subr.bf16.mxu0 0
    %1680 = vmatpush1.bf16.msra.mxu0 %v1656
    %1681 = vmatprep.subr.bf16.mxu0 0
    %1682 = vmatpush1.bf16.msra.mxu0 0
    %1683 = vmatprep.subr.bf16.mxu0 0
    %1684 = vmatpush1.bf16.msra.mxu0 0
    %1685 = vmatprep.subr.bf16.mxu0 0
    %1686 = vmatpush1.bf16.msra.mxu0 0
    %1687 = vmatprep.subr.bf16.mxu0 0
    %1688 = vmatpush1.bf16.msra.mxu0 0
    %1689 = vmatprep.subr.bf16.mxu0 0
    %1690 = vmatpush1.bf16.msra.mxu0 0
    %1691 = vmatprep.subr.bf16.mxu0 0
    %1692 = vmatpush1.bf16.msra.mxu0 0
    %1693 = vmatprep.subr.bf16.mxu0 0
    %1694 = vmatpush1.bf16.msra.mxu0 0
    %1695 = vmatprep.subr.bf16.mxu0 0
    %1696 = vmatpush1.bf16.msra.mxu0 0
    %1697 = vmatprep.mubr.bf16.mxu0 0
    %1698 = vmatmul.mubr.bf16.gmra.mrb[0].mxu0 %v1615
    %v1699 = vpop.f32.mrb[0].mxu0
    %v1700 = vadd.f32 0.0, %v1699
    %v1701 = vpop.f32.mrb[0].mxu0
    %v1702 = vpop.f32.mrb[0].mxu0
    %v1703 = vpop.f32.mrb[0].mxu0
    %1704 = vdwg.mxu0
    %v1706 = vrot.slane %v1700, 1
    %v1707 = vrot.slane %v1700, 2
    %v1708 = vrot.slane %v1700, 3
    %v1709 = vrot.slane %v1700, 4
    %v1710 = vrot.slane %v1700, 5
    %v1711 = vrot.slane %v1700, 6
    %v1712 = vrot.slane %v1700, 7
    %v1721 = vadd.f32 %v1553, %v1700
    %v1722 = vadd.f32 %v1554, %v1706
    %v1723 = vadd.f32 %v1555, %v1707
    %v1724 = vadd.f32 %v1556, %v1708
    %v1725 = vadd.f32 %v1557, %v1709
    %v1726 = vadd.f32 %v1558, %v1710
    %v1727 = vadd.f32 %v1559, %v1711
    %v1728 = vadd.f32 %v1560, %v1712
    %v1729 = vtanh.pop %v1721
    %v1730 = vtanh.pop %v1722
    %v1731 = vtanh.pop %v1723
    %v1732 = vtanh.pop %v1724
    %v1733 = vtanh.pop %v1725
    %v1734 = vtanh.pop %v1726
    %v1735 = vtanh.pop %v1727
    %v1736 = vtanh.pop %v1728
    %1737 = vst [vmem:[#allocation2 + $0x7] sm:$0x1] %v1729
    %1738 = vst [vmem:[#allocation2 + $0xf] sm:$0x1] %v1730
    %1739 = vst [vmem:[#allocation2 + $0x17] sm:$0x1] %v1731
    %1740 = vst [vmem:[#allocation2 + $0x1f] sm:$0x1] %v1732
    %1741 = vst [vmem:[#allocation2 + $0x27] sm:$0x1] %v1733
    %1742 = vst [vmem:[#allocation2 + $0x2f] sm:$0x1] %v1734
    %1743 = vst [vmem:[#allocation2 + $0x37] sm:$0x1] %v1735
    %1744 = vst [vmem:[#allocation2 + $0x3f] sm:$0x1] %v1736
    %v1753 = vrot.slane %v1730, 7
    %v1754 = vsel %vm443, %v1753, %v1729
    %v1755 = vrot.slane %v1731, 6
    %v1756 = vsel %vm446, %v1755, %v1754
    %v1757 = vrot.slane %v1732, 5
    %v1758 = vsel %vm449, %v1757, %v1756
    %v1759 = vrot.slane %v1733, 4
    %v1760 = vsel %vm452, %v1759, %v1758
    %v1761 = vrot.slane %v1734, 3
    %v1762 = vsel %vm455, %v1761, %v1760
    %v1763 = vrot.slane %v1735, 2
    %v1764 = vsel %vm458, %v1763, %v1762
    %v1765 = vrot.slane %v1736, 1
    %v1766 = vsel %vm461, %v1765, %v1764
    %1768 = vst [vmem:[#allocation3] sm:$0xff] %v1766
    %v1769 = vld [vmem:[#allocation2] sm:$0xff]
    %v1770 = vld [vmem:[#allocation2 + $0x8] sm:$0xff]
    %v1771 = vld [vmem:[#allocation2 + $0x10] sm:$0xff]
    %v1772 = vld [vmem:[#allocation2 + $0x18] sm:$0xff]
    %v1773 = vld [vmem:[#allocation2 + $0x20] sm:$0xff]
    %v1774 = vld [vmem:[#allocation2 + $0x28] sm:$0xff]
    %v1775 = vld [vmem:[#allocation2 + $0x30] sm:$0xff]
    %v1776 = vld [vmem:[#allocation2 + $0x38] sm:$0xff]
    %v1777 = vpack.c.bf16 %v1770, %v1769
    %v1778 = vpack.c.bf16 %v1772, %v1771
    %v1779 = vpack.c.bf16 %v1774, %v1773
    %v1780 = vpack.c.bf16 %v1776, %v1775
    %v1781 = vld [vmem:[#allocation12] sm:$0xf]
    %v1782 = vld [vmem:[#allocation12 + $0x4] sm:$0xf]
    %v1783 = vld [vmem:[#allocation12 + $0x8] sm:$0xf]
    %v1784 = vld [vmem:[#allocation12 + $0xc] sm:$0xf]
    %v1785 = vld [vmem:[#allocation12 + $0x10] sm:$0xf]
    %v1786 = vld [vmem:[#allocation12 + $0x14] sm:$0xf]
    %v1787 = vld [vmem:[#allocation12 + $0x18] sm:$0xf]
    %v1788 = vld [vmem:[#allocation12 + $0x1c] sm:$0xf]
    %v1789 = vld [vmem:[#allocation12 + $0x20] sm:$0xf]
    %v1790 = vld [vmem:[#allocation12 + $0x24] sm:$0xf]
    %v1791 = vld [vmem:[#allocation12 + $0x28] sm:$0xf]
    %v1792 = vld [vmem:[#allocation12 + $0x2c] sm:$0xf]
    %v1793 = vld [vmem:[#allocation12 + $0x30] sm:$0xf]
    %v1794 = vld [vmem:[#allocation12 + $0x34] sm:$0xf]
    %v1795 = vld [vmem:[#allocation12 + $0x38] sm:$0xf]
    %v1796 = vld [vmem:[#allocation12 + $0x3c] sm:$0xf]
    %v1797 = vld [vmem:[#allocation13] sm:$0x1]
    %v1799 = vlaneseq
    %v1800 = vshrl.u32 %v1799, 7
    %v1801 = vsub.s32 0, %v1800
    %v1802 = vrot.slane %v1797, %v1801
    %v1820 = vunpack.c.l.b16 %v1781
    %v1821 = vunpack.c.l.b16 %v1782
    %v1822 = vunpack.c.l.b16 %v1783
    %v1823 = vunpack.c.l.b16 %v1784
    %v1824 = vunpack.c.l.b16 %v1785
    %v1825 = vunpack.c.l.b16 %v1786
    %v1826 = vunpack.c.l.b16 %v1787
    %v1827 = vunpack.c.l.b16 %v1788
    %v1828 = vunpack.c.l.b16 %v1789
    %v1829 = vunpack.c.l.b16 %v1790
    %v1830 = vunpack.c.l.b16 %v1791
    %v1831 = vunpack.c.l.b16 %v1792
    %v1832 = vunpack.c.l.b16 %v1793
    %v1833 = vunpack.c.l.b16 %v1794
    %v1834 = vunpack.c.l.b16 %v1795
    %v1835 = vunpack.c.l.b16 %v1796
    %v1836 = vpack.c.b16 %v1821, %v1820
    %v1837 = vpack.c.b16 %v1823, %v1822
    %v1838 = vpack.c.b16 %v1825, %v1824
    %v1839 = vpack.c.b16 %v1827, %v1826
    %v1840 = vpack.c.b16 %v1829, %v1828
    %v1841 = vpack.c.b16 %v1831, %v1830
    %v1842 = vpack.c.b16 %v1833, %v1832
    %v1843 = vpack.c.b16 %v1835, %v1834
    %1852 = vmatprep.subr.bf16.mxu0 0
    %1853 = vmatpush1.bf16.msra.mxu0 %v1836
    %1854 = vmatprep.subr.bf16.mxu0 0
    %1855 = vmatpush1.bf16.msra.mxu0 %v1837
    %1856 = vmatprep.subr.bf16.mxu0 0
    %1857 = vmatpush1.bf16.msra.mxu0 %v1838
    %1858 = vmatprep.subr.bf16.mxu0 0
    %1859 = vmatpush1.bf16.msra.mxu0 %v1839
    %1860 = vmatprep.subr.bf16.mxu0 0
    %1861 = vmatpush1.bf16.msra.mxu0 %v1840
    %1862 = vmatprep.subr.bf16.mxu0 0
    %1863 = vmatpush1.bf16.msra.mxu0 %v1841
    %1864 = vmatprep.subr.bf16.mxu0 0
    %1865 = vmatpush1.bf16.msra.mxu0 %v1842
    %1866 = vmatprep.subr.bf16.mxu0 0
    %1867 = vmatpush1.bf16.msra.mxu0 %v1843
    %1868 = vmatprep.subr.bf16.mxu0 0
    %1869 = vmatpush1.bf16.msra.mxu0 0
    %1870 = vmatprep.subr.bf16.mxu0 0
    %1871 = vmatpush1.bf16.msra.mxu0 0
    %1872 = vmatprep.subr.bf16.mxu0 0
    %1873 = vmatpush1.bf16.msra.mxu0 0
    %1874 = vmatprep.subr.bf16.mxu0 0
    %1875 = vmatpush1.bf16.msra.mxu0 0
    %1876 = vmatprep.subr.bf16.mxu0 0
    %1877 = vmatpush1.bf16.msra.mxu0 0
    %1878 = vmatprep.subr.bf16.mxu0 0
    %1879 = vmatpush1.bf16.msra.mxu0 0
    %1880 = vmatprep.subr.bf16.mxu0 0
    %1881 = vmatpush1.bf16.msra.mxu0 0
    %1882 = vmatprep.subr.bf16.mxu0 0
    %1883 = vmatpush1.bf16.msra.mxu0 0
    %1884 = vmatprep.mubr.bf16.mxu0 0
    %1885 = vmatmul.mubr.bf16.gmra.mrb[0].mxu0 %v1777
    %v1886 = vpop.f32.mrb[0].mxu0
    %v1887 = vadd.f32 %v1802, %v1886
    %v1888 = vpop.f32.mrb[0].mxu0
    %v1889 = vpop.f32.mrb[0].mxu0
    %v1890 = vadd.f32 %v1802, %v1889
    %v1891 = vpop.f32.mrb[0].mxu0
    %1892 = vmatprep.mubr.bf16.mxu0 0
    %1893 = vmatmul.mubr.bf16.gmra.mrb[0].mxu0 %v1778
    %v1894 = vpop.f32.mrb[0].mxu0
    %v1895 = vadd.f32 %v1802, %v1894
    %v1896 = vpop.f32.mrb[0].mxu0
    %v1897 = vpop.f32.mrb[0].mxu0
    %v1898 = vadd.f32 %v1802, %v1897
    %v1899 = vpop.f32.mrb[0].mxu0
    %1900 = vmatprep.mubr.bf16.mxu0 0
    %1901 = vmatmul.mubr.bf16.gmra.mrb[0].mxu0 %v1779
    %v1902 = vpop.f32.mrb[0].mxu0
    %v1903 = vadd.f32 %v1802, %v1902
    %v1904 = vpop.f32.mrb[0].mxu0
    %v1905 = vpop.f32.mrb[0].mxu0
    %v1906 = vadd.f32 %v1802, %v1905
    %v1907 = vpop.f32.mrb[0].mxu0
    %1908 = vmatprep.mubr.bf16.mxu0 0
    %1909 = vmatmul.mubr.bf16.gmra.mrb[0].mxu0 %v1780
    %v1910 = vpop.f32.mrb[0].mxu0
    %v1911 = vadd.f32 %v1802, %v1910
    %v1912 = vpop.f32.mrb[0].mxu0
    %v1913 = vpop.f32.mrb[0].mxu0
    %v1914 = vadd.f32 %v1802, %v1913
    %v1915 = vpop.f32.mrb[0].mxu0
    %1916 = vdwg.mxu0
    %1917 = vst [vmem:[#allocation15] sm:$0xff] %v1887
    %1918 = vst [vmem:[#allocation15 + $0x8] sm:$0xff] %v1890
    %1919 = vst [vmem:[#allocation15 + $0x10] sm:$0xff] %v1895
    %1920 = vst [vmem:[#allocation15 + $0x18] sm:$0xff] %v1898
    %1921 = vst [vmem:[#allocation15 + $0x20] sm:$0xff] %v1903
    %1922 = vst [vmem:[#allocation15 + $0x28] sm:$0xff] %v1906
    %1923 = vst [vmem:[#allocation15 + $0x30] sm:$0xff] %v1911
    %1924 = vst [vmem:[#allocation15 + $0x38] sm:$0xff] %v1914
    // Predicated region
    $region54: #{exastar_genome_forward.1} parent=1 // pred_check
      _
    $region55: #{exastar_genome_forward.1} parent=1 // pred_check_branch
      %1926 = sbr.rel (0) target = $region57
    $region56: #{exastar_genome_forward.1} parent=1 // pred_region
      %s1928 = ssub.s32 1024, 1024
      %1929 = vsyncadd [#allocation6], %s1928
      %s1930 = sshll.u32 [#allocation15], 4
      %s1931 = int_to_ptr.vmem [resolvable:$true] %s1930
      %1936 = dma.vmem_to_hbm [thread:$0]  %s1931, 1024, %s6, [#allocation6], 128, 128, 8
    $region57: #{exastar_genome_forward.1} parent=1 // pred_fallthru
      _
    // Predicated region
    $region58: #{exastar_genome_forward.1} parent=1 // pred_check
      _
    $region59: #{exastar_genome_forward.1} parent=1 // pred_check_branch
      %1938 = sbr.rel (0) target = $region61
    $region60: #{exastar_genome_forward.1} parent=1 // pred_region
      %1939 = dma.done [#allocation6], 1024
    $region61: #{exastar_genome_forward.1} parent=1 // pred_fallthru
      _
    %1940 = vsyncpa [#allocation5], 1
    %1941 = vsyncpa [#allocation8], 1
    %1942 = vsyncpa [#allocation11], 1
    %1943 = vsyncpa [#allocation14], 1
    %1944 = vsyncpa [#allocation6], 1

</llo_original>
